<compile_context>
chip_gen: v5e
topology: v5e:2x2
jax: 0.10.0
libtpu: 0.0.40
codegen_flags: <defaults>
</compile_context>

<pallas_src>
import functools

import numpy as np
import jax
import jax.numpy as jnp
from jax.experimental import pallas as pl
from jax.experimental.pallas import tpu as pltpu

# ----- module hyper-parameters (Quanv2DLayer defaults; out_channels is chosen
# so the torch `.view()` in quanvolve is valid, i.e. out_channels//in_channels
# == n_qubits, giving C * n_qubits output channels).
N_QUBITS = 4
KERNEL_SIZE = (2, 2)
STRIDE = 2
N_LAYERS = 1

SUBLANE_TILE = 8
LANE_TILE = 128
BLOCK_PATCHES = SUBLANE_TILE * LANE_TILE   # 1024 patches per grid step


def _bit(q, nq):
    # PennyLane convention: wire 0 is the most-significant bit of the basis index.
    return 1 << (nq - 1 - q)


def _ring_cnots(nq):
    return [(0, 1)] if nq == 2 else [(q, (q + 1) % nq) for q in range(nq)]


# --------------------------------------------------------------------------- #
# Pallas kernel: exact statevector simulation of the quanvolution circuit      #
# --------------------------------------------------------------------------- #
def _quanv_kernel(cs_ref, x_ref, o_ref, *, n_qubits, n_layers):
    nq = n_qubits
    dim = 1 << nq
    wrows = n_layers * nq
    sub, lane = x_ref.shape[-2], x_ref.shape[-1]

    zero = jnp.zeros((sub, lane), jnp.float32)

    # --- AngleEmbedding (default rotation 'X') acting on |0..0>, built as a
    # product state: amp_r = (-i)^popcount(r) * prod_q (cos or sin of x_q/2).
    cos_h = [jnp.cos(x_ref[q].astype(jnp.float32) * 0.5) for q in range(nq)]
    sin_h = [jnp.sin(x_ref[q].astype(jnp.float32) * 0.5) for q in range(nq)]
    prods = [cos_h[0], sin_h[0]]                # qubit 0 ends up as the MSB
    for q in range(1, nq):
        nxt = []
        for p in prods:
            nxt.append(p * cos_h[q])
            nxt.append(p * sin_h[q])
        prods = nxt

    re = [None] * dim
    im = [None] * dim
    for r in range(dim):
        pc = bin(r).count("1") % 4
        if pc == 0:
            re[r], im[r] = prods[r], zero
        elif pc == 1:
            re[r], im[r] = zero, -prods[r]
        elif pc == 2:
            re[r], im[r] = -prods[r], zero
        else:
            re[r], im[r] = zero, prods[r]

    # --- gate helpers: pairwise, in-place (low live-vreg count).
    def apply_rx(c, s, q):
        # RX(theta): new[r] = cos(t/2) old[r] - i sin(t/2) old[r ^ bit(q)]
        b = _bit(q, nq)
        for r in range(dim):
            if r & b:
                continue
            p = r | b
            re_r, im_r, re_p, im_p = re[r], im[r], re[p], im[p]
            re[r] = c * re_r + s * im_p
            im[r] = c * im_r - s * re_p
            re[p] = c * re_p + s * im_r
            im[p] = c * im_p - s * re_r

    def apply_cnot(cq, tq):
        # Pure relabeling of the amplitude lists -- zero VPU work.
        bc, bt = _bit(cq, nq), _bit(tq, nq)
        for r in range(dim):
            if (r & bc) and not (r & bt):
                p = r | bt
                re[r], re[p] = re[p], re[r]
                im[r], im[p] = im[p], im[r]

    # --- BasicEntanglerLayers (default rotation RX) + closed ring of CNOTs.
    for l in range(n_layers):
        for q in range(nq):
            row = l * nq + q
            c = cs_ref[row]            # scalar cos(w/2) from SMEM
            s = cs_ref[wrows + row]    # scalar sin(w/2) from SMEM
            apply_rx(c, s, q)
        for cq, tq in _ring_cnots(nq):
            apply_cnot(cq, tq)

    # --- <Z_q> = sum_r (+/-1)^{bit_q(r)} |amp_r|^2, one direct row store per qubit.
    probs = [re[r] * re[r] + im[r] * im[r] for r in range(dim)]
    for q in range(nq):
        b = _bit(q, nq)
        pos = None
        neg = None
        for r in range(dim):
            if r & b:
                neg = probs[r] if neg is None else neg + probs[r]
            else:
                pos = probs[r] if pos is None else pos + probs[r]
        o_ref[q] = (pos - neg).astype(o_ref.dtype)


def _run_circuit_kernel(angles, weights, n_qubits, n_layers):
    """angles: (n_qubits, N) patch angles -> (n_qubits, N) PauliZ expvals."""
    nq, n = angles.shape
    n_pad = ((n + BLOCK_PATCHES - 1) // BLOCK_PATCHES) * BLOCK_PATCHES
    xk = jnp.pad(angles.astype(jnp.float32), ((0, 0), (0, n_pad - n)))
    xk = xk.reshape(nq, n_pad // LANE_TILE, LANE_TILE)

    wrows = n_layers * n_qubits
    w_half = weights.reshape(wrows).astype(jnp.float32) * 0.5
    cs = jnp.concatenate([jnp.cos(w_half), jnp.sin(w_half)])   # (2*wrows,) scalars

    kernel = functools.partial(_quanv_kernel, n_qubits=n_qubits, n_layers=n_layers)
    n_blocks = n_pad // BLOCK_PATCHES
    out = pl.pallas_call(
        kernel,
        out_shape=jax.ShapeDtypeStruct((nq, n_pad // LANE_TILE, LANE_TILE),
                                       jnp.float32),
        grid=(n_blocks,),
        in_specs=[
            pl.BlockSpec(memory_space=pltpu.MemorySpace.SMEM),    # cos/sin(w/2) scalars
            pl.BlockSpec((nq, SUBLANE_TILE, LANE_TILE), lambda i: (0, i, 0)),
        ],
        out_specs=pl.BlockSpec((nq, SUBLANE_TILE, LANE_TILE), lambda i: (0, i, 0)),
        compiler_params=pltpu.CompilerParams(dimension_semantics=("parallel",)),
    )(cs, xk)
    return out.reshape(nq, n_pad)[:, :n]


# --------------------------------------------------------------------------- #
# Glue: patch extraction (== torch.nn.functional.unfold) and output reshaping  #
# --------------------------------------------------------------------------- #
def _extract_patch_angles(x, kernel_size, stride):
    """x: (B, C, H, W) -> (kh*kw, B, C, h_out, w_out), torch-unfold feature order."""
    B, C, H, W = x.shape
    kh, kw = kernel_size
    h_out = (H - kh) // stride + 1
    w_out = (W - kw) // stride + 1
    feats = []
    for di in range(kh):
        for dj in range(kw):
            feats.append(x[:, :, di:di + (h_out - 1) * stride + 1:stride,
                               dj:dj + (w_out - 1) * stride + 1:stride])
    return jnp.stack(feats, axis=0), h_out, w_out


def quanv2d_forward(x, weights, *, n_qubits=N_QUBITS, kernel_size=KERNEL_SIZE,
                    stride=STRIDE, n_layers=N_LAYERS):
    B, C, H, W = x.shape
    assert kernel_size[0] * kernel_size[1] == n_qubits
    angles, h_out, w_out = _extract_patch_angles(x, kernel_size, stride)
    flat = angles.reshape(n_qubits, B * C * h_out * w_out)          # (nq, N)
    expvals = _run_circuit_kernel(flat, weights, n_qubits, n_layers)  # (nq, N)
    out = expvals.reshape(n_qubits, B, C, h_out, w_out)
    out = jnp.transpose(out, (1, 2, 0, 3, 4)).reshape(B, C * n_qubits, h_out, w_out)
    return out


# --------------------------------------------------------------------------- #
# Pure-JAX reference (complex statevector) used only for validation            #
# --------------------------------------------------------------------------- #
def _circuit_ref_single(feat, weights):
    nq = feat.shape[0]
    dim = 1 << nq
    eye2 = jnp.eye(2, dtype=jnp.complex64)

    def rx_full(theta, q):
        c = jnp.cos(theta * 0.5).astype(jnp.complex64)
        s = jnp.sin(theta * 0.5).astype(jnp.complex64)
        g = jnp.stack([jnp.stack([c, -1j * s]), jnp.stack([-1j * s, c])])
        m = jnp.ones((1, 1), jnp.complex64)
        for i in range(nq):
            m = jnp.kron(m, g if i == q else eye2)
        return m

    def cnot_full(cq, tq):
        idx = np.arange(dim)
        bc, bt = _bit(cq, nq), _bit(tq, nq)
        f = np.where(idx & bc, idx ^ bt, idx)
        m = np.zeros((dim, dim), np.complex64)
        m[f, idx] = 1.0
        return jnp.asarray(m)

    psi = jnp.zeros((dim,), jnp.complex64).at[0].set(1.0 + 0j)
    for q in range(nq):
        psi = rx_full(feat[q], q) @ psi
    for l in range(weights.shape[0]):
        for q in range(nq):
            psi = rx_full(weights[l, q], q) @ psi
        for cq, tq in _ring_cnots(nq):
            psi = cnot_full(cq, tq) @ psi
    probs = jnp.real(psi * jnp.conj(psi))
    z = []
    for q in range(nq):
        sign = (1.0 - 2.0 * ((np.arange(dim) >> (nq - 1 - q)) & 1)).astype(np.float32)
        z.append(jnp.sum(jnp.asarray(sign) * probs))
    return jnp.stack(z)


def quanv2d_forward_ref(x, weights, *, n_qubits=N_QUBITS, kernel_size=KERNEL_SIZE,
                        stride=STRIDE):
    B, C, H, W = x.shape
    angles, h_out, w_out = _extract_patch_angles(x, kernel_size, stride)
    flat = angles.reshape(n_qubits, B * C * h_out * w_out).T        # (N, nq)
    expvals = jax.vmap(_circuit_ref_single, in_axes=(0, None))(flat, weights)
    out = expvals.T.reshape(n_qubits, B, C, h_out, w_out)
    out = jnp.transpose(out, (1, 2, 0, 3, 4)).reshape(B, C * n_qubits, h_out, w_out)
    return out


if __name__ == "__main__":
    key = jax.random.PRNGKey(0)
    kx, kw = jax.random.split(key)
    B, C, H, W = 2, 4, 16, 16
    x = jax.random.uniform(kx, (B, C, H, W), jnp.float32, 0.0, float(np.pi))
    # Variational weights (n_layers, n_qubits) in [0, 2*pi).
    weights = jax.random.uniform(kw, (N_LAYERS, N_QUBITS), jnp.float32,
                                 0.0, 2.0 * float(np.pi))

    out = jax.block_until_ready(jax.jit(quanv2d_forward)(x, weights))
    ref = jax.block_until_ready(jax.jit(quanv2d_forward_ref)(x, weights))

    h_out = (H - KERNEL_SIZE[0]) // STRIDE + 1
    w_out = (W - KERNEL_SIZE[1]) // STRIDE + 1
    assert out.shape == (B, C * N_QUBITS, h_out, w_out), out.shape
    np.testing.assert_allclose(np.asarray(out), np.asarray(ref), rtol=1e-4, atol=1e-5)
    print("KERNEL_OK")
</pallas_src>

<mosaic_0001>
module attributes {stable_mosaic.version = 11 : i64} {
  func.func @_quanv_kernel(%arg0: i32, %arg1: memref<8xf32, #tpu.memory_space<smem>>, %arg2: memref<4x8x128xf32, #tpu.memory_space<vmem>>, %arg3: memref<4x8x128xf32, #tpu.memory_space<vmem>>) attributes {dimension_semantics = [#tpu.dimension_semantics<parallel>], iteration_bounds = array<i64: 1>, scalar_prefetch = 0 : i64, scratch_operands = 0 : i64, tpu.core_type = #tpu.core_type<tc>, window_params = [{transform_indices = @transform_0, window_bounds = array<i64: 8>}, {transform_indices = @transform_1, window_bounds = array<i64: 4, 8, 128>}, {transform_indices = @transform_2, window_bounds = array<i64: 4, 8, 128>}]} {
    %cst = arith.constant 0.000000e+00 : f32
    %0 = vector.broadcast %cst : f32 to vector<8x128xf32>
    %c0 = arith.constant 0 : index
    %c0_0 = arith.constant 0 : index
    %c0_1 = arith.constant 0 : index
    %1 = vector.load %arg2[%c0, %c0_0, %c0_1] : memref<4x8x128xf32, #tpu.memory_space<vmem>>, vector<1x8x128xf32>
    %2 = vector.shape_cast %1 : vector<1x8x128xf32> to vector<8x128xf32>
    %cst_2 = arith.constant 5.000000e-01 : f32
    %3 = vector.broadcast %cst_2 : f32 to vector<8x128xf32>
    %4 = arith.mulf %2, %3 : vector<8x128xf32>
    %5 = math.cos %4 : vector<8x128xf32>
    %c1 = arith.constant 1 : index
    %c0_3 = arith.constant 0 : index
    %c0_4 = arith.constant 0 : index
    %6 = vector.load %arg2[%c1, %c0_3, %c0_4] : memref<4x8x128xf32, #tpu.memory_space<vmem>>, vector<1x8x128xf32>
    %7 = vector.shape_cast %6 : vector<1x8x128xf32> to vector<8x128xf32>
    %cst_5 = arith.constant 5.000000e-01 : f32
    %8 = vector.broadcast %cst_5 : f32 to vector<8x128xf32>
    %9 = arith.mulf %7, %8 : vector<8x128xf32>
    %10 = math.cos %9 : vector<8x128xf32>
    %c2 = arith.constant 2 : index
    %c0_6 = arith.constant 0 : index
    %c0_7 = arith.constant 0 : index
    %11 = vector.load %arg2[%c2, %c0_6, %c0_7] : memref<4x8x128xf32, #tpu.memory_space<vmem>>, vector<1x8x128xf32>
    %12 = vector.shape_cast %11 : vector<1x8x128xf32> to vector<8x128xf32>
    %cst_8 = arith.constant 5.000000e-01 : f32
    %13 = vector.broadcast %cst_8 : f32 to vector<8x128xf32>
    %14 = arith.mulf %12, %13 : vector<8x128xf32>
    %15 = math.cos %14 : vector<8x128xf32>
    %c3 = arith.constant 3 : index
    %c0_9 = arith.constant 0 : index
    %c0_10 = arith.constant 0 : index
    %16 = vector.load %arg2[%c3, %c0_9, %c0_10] : memref<4x8x128xf32, #tpu.memory_space<vmem>>, vector<1x8x128xf32>
    %17 = vector.shape_cast %16 : vector<1x8x128xf32> to vector<8x128xf32>
    %cst_11 = arith.constant 5.000000e-01 : f32
    %18 = vector.broadcast %cst_11 : f32 to vector<8x128xf32>
    %19 = arith.mulf %17, %18 : vector<8x128xf32>
    %20 = math.cos %19 : vector<8x128xf32>
    %c0_12 = arith.constant 0 : index
    %c0_13 = arith.constant 0 : index
    %c0_14 = arith.constant 0 : index
    %21 = vector.load %arg2[%c0_12, %c0_13, %c0_14] : memref<4x8x128xf32, #tpu.memory_space<vmem>>, vector<1x8x128xf32>
    %22 = vector.shape_cast %21 : vector<1x8x128xf32> to vector<8x128xf32>
    %cst_15 = arith.constant 5.000000e-01 : f32
    %23 = vector.broadcast %cst_15 : f32 to vector<8x128xf32>
    %24 = arith.mulf %22, %23 : vector<8x128xf32>
    %25 = math.sin %24 : vector<8x128xf32>
    %c1_16 = arith.constant 1 : index
    %c0_17 = arith.constant 0 : index
    %c0_18 = arith.constant 0 : index
    %26 = vector.load %arg2[%c1_16, %c0_17, %c0_18] : memref<4x8x128xf32, #tpu.memory_space<vmem>>, vector<1x8x128xf32>
    %27 = vector.shape_cast %26 : vector<1x8x128xf32> to vector<8x128xf32>
    %cst_19 = arith.constant 5.000000e-01 : f32
    %28 = vector.broadcast %cst_19 : f32 to vector<8x128xf32>
    %29 = arith.mulf %27, %28 : vector<8x128xf32>
    %30 = math.sin %29 : vector<8x128xf32>
    %c2_20 = arith.constant 2 : index
    %c0_21 = arith.constant 0 : index
    %c0_22 = arith.constant 0 : index
    %31 = vector.load %arg2[%c2_20, %c0_21, %c0_22] : memref<4x8x128xf32, #tpu.memory_space<vmem>>, vector<1x8x128xf32>
    %32 = vector.shape_cast %31 : vector<1x8x128xf32> to vector<8x128xf32>
    %cst_23 = arith.constant 5.000000e-01 : f32
    %33 = vector.broadcast %cst_23 : f32 to vector<8x128xf32>
    %34 = arith.mulf %32, %33 : vector<8x128xf32>
    %35 = math.sin %34 : vector<8x128xf32>
    %c3_24 = arith.constant 3 : index
    %c0_25 = arith.constant 0 : index
    %c0_26 = arith.constant 0 : index
    %36 = vector.load %arg2[%c3_24, %c0_25, %c0_26] : memref<4x8x128xf32, #tpu.memory_space<vmem>>, vector<1x8x128xf32>
    %37 = vector.shape_cast %36 : vector<1x8x128xf32> to vector<8x128xf32>
    %cst_27 = arith.constant 5.000000e-01 : f32
    %38 = vector.broadcast %cst_27 : f32 to vector<8x128xf32>
    %39 = arith.mulf %37, %38 : vector<8x128xf32>
    %40 = math.sin %39 : vector<8x128xf32>
    %41 = arith.mulf %5, %10 : vector<8x128xf32>
    %42 = arith.mulf %5, %30 : vector<8x128xf32>
    %43 = arith.mulf %25, %10 : vector<8x128xf32>
    %44 = arith.mulf %25, %30 : vector<8x128xf32>
    %45 = arith.mulf %41, %15 : vector<8x128xf32>
    %46 = arith.mulf %41, %35 : vector<8x128xf32>
    %47 = arith.mulf %42, %15 : vector<8x128xf32>
    %48 = arith.mulf %42, %35 : vector<8x128xf32>
    %49 = arith.mulf %43, %15 : vector<8x128xf32>
    %50 = arith.mulf %43, %35 : vector<8x128xf32>
    %51 = arith.mulf %44, %15 : vector<8x128xf32>
    %52 = arith.mulf %44, %35 : vector<8x128xf32>
    %53 = arith.mulf %45, %20 : vector<8x128xf32>
    %54 = arith.mulf %45, %40 : vector<8x128xf32>
    %55 = arith.mulf %46, %20 : vector<8x128xf32>
    %56 = arith.mulf %46, %40 : vector<8x128xf32>
    %57 = arith.mulf %47, %20 : vector<8x128xf32>
    %58 = arith.mulf %47, %40 : vector<8x128xf32>
    %59 = arith.mulf %48, %20 : vector<8x128xf32>
    %60 = arith.mulf %48, %40 : vector<8x128xf32>
    %61 = arith.mulf %49, %20 : vector<8x128xf32>
    %62 = arith.mulf %49, %40 : vector<8x128xf32>
    %63 = arith.mulf %50, %20 : vector<8x128xf32>
    %64 = arith.mulf %50, %40 : vector<8x128xf32>
    %65 = arith.mulf %51, %20 : vector<8x128xf32>
    %66 = arith.mulf %51, %40 : vector<8x128xf32>
    %67 = arith.mulf %52, %20 : vector<8x128xf32>
    %68 = arith.mulf %52, %40 : vector<8x128xf32>
    %cst_28 = arith.constant 0.000000e+00 : f32
    %69 = vector.broadcast %cst_28 : f32 to vector<8x128xf32>
    %70 = arith.subf %69, %54 : vector<8x128xf32>
    %cst_29 = arith.constant 0.000000e+00 : f32
    %71 = vector.broadcast %cst_29 : f32 to vector<8x128xf32>
    %72 = arith.subf %71, %55 : vector<8x128xf32>
    %cst_30 = arith.constant 0.000000e+00 : f32
    %73 = vector.broadcast %cst_30 : f32 to vector<8x128xf32>
    %74 = arith.subf %73, %56 : vector<8x128xf32>
    %cst_31 = arith.constant 0.000000e+00 : f32
    %75 = vector.broadcast %cst_31 : f32 to vector<8x128xf32>
    %76 = arith.subf %75, %57 : vector<8x128xf32>
    %cst_32 = arith.constant 0.000000e+00 : f32
    %77 = vector.broadcast %cst_32 : f32 to vector<8x128xf32>
    %78 = arith.subf %77, %58 : vector<8x128xf32>
    %cst_33 = arith.constant 0.000000e+00 : f32
    %79 = vector.broadcast %cst_33 : f32 to vector<8x128xf32>
    %80 = arith.subf %79, %59 : vector<8x128xf32>
    %cst_34 = arith.constant 0.000000e+00 : f32
    %81 = vector.broadcast %cst_34 : f32 to vector<8x128xf32>
    %82 = arith.subf %81, %61 : vector<8x128xf32>
    %cst_35 = arith.constant 0.000000e+00 : f32
    %83 = vector.broadcast %cst_35 : f32 to vector<8x128xf32>
    %84 = arith.subf %83, %62 : vector<8x128xf32>
    %cst_36 = arith.constant 0.000000e+00 : f32
    %85 = vector.broadcast %cst_36 : f32 to vector<8x128xf32>
    %86 = arith.subf %85, %63 : vector<8x128xf32>
    %cst_37 = arith.constant 0.000000e+00 : f32
    %87 = vector.broadcast %cst_37 : f32 to vector<8x128xf32>
    %88 = arith.subf %87, %65 : vector<8x128xf32>
    %c0_38 = arith.constant 0 : index
    %89 = memref.load %arg1[%c0_38] : memref<8xf32, #tpu.memory_space<smem>>
    %c4 = arith.constant 4 : index
    %90 = memref.load %arg1[%c4] : memref<8xf32, #tpu.memory_space<smem>>
    %91 = vector.broadcast %89 : f32 to vector<8x128xf32>
    %92 = arith.mulf %91, %53 : vector<8x128xf32>
    %93 = vector.broadcast %90 : f32 to vector<8x128xf32>
    %94 = arith.mulf %93, %82 : vector<8x128xf32>
    %95 = arith.addf %92, %94 : vector<8x128xf32>
    %96 = vector.broadcast %89 : f32 to vector<8x128xf32>
    %97 = arith.mulf %96, %0 : vector<8x128xf32>
    %98 = vector.broadcast %90 : f32 to vector<8x128xf32>
    %99 = arith.mulf %98, %0 : vector<8x128xf32>
    %100 = arith.subf %97, %99 : vector<8x128xf32>
    %101 = vector.broadcast %89 : f32 to vector<8x128xf32>
    %102 = arith.mulf %101, %0 : vector<8x128xf32>
    %103 = vector.broadcast %90 : f32 to vector<8x128xf32>
    %104 = arith.mulf %103, %0 : vector<8x128xf32>
    %105 = arith.addf %102, %104 : vector<8x128xf32>
    %106 = vector.broadcast %89 : f32 to vector<8x128xf32>
    %107 = arith.mulf %106, %82 : vector<8x128xf32>
    %108 = vector.broadcast %90 : f32 to vector<8x128xf32>
    %109 = arith.mulf %108, %53 : vector<8x128xf32>
    %110 = arith.subf %107, %109 : vector<8x128xf32>
    %111 = vector.broadcast %89 : f32 to vector<8x128xf32>
    %112 = arith.mulf %111, %0 : vector<8x128xf32>
    %113 = vector.broadcast %90 : f32 to vector<8x128xf32>
    %114 = arith.mulf %113, %0 : vector<8x128xf32>
    %115 = arith.addf %112, %114 : vector<8x128xf32>
    %116 = vector.broadcast %89 : f32 to vector<8x128xf32>
    %117 = arith.mulf %116, %70 : vector<8x128xf32>
    %118 = vector.broadcast %90 : f32 to vector<8x128xf32>
    %119 = arith.mulf %118, %84 : vector<8x128xf32>
    %120 = arith.subf %117, %119 : vector<8x128xf32>
    %121 = vector.broadcast %89 : f32 to vector<8x128xf32>
    %122 = arith.mulf %121, %84 : vector<8x128xf32>
    %123 = vector.broadcast %90 : f32 to vector<8x128xf32>
    %124 = arith.mulf %123, %70 : vector<8x128xf32>
    %125 = arith.addf %122, %124 : vector<8x128xf32>
    %126 = vector.broadcast %89 : f32 to vector<8x128xf32>
    %127 = arith.mulf %126, %0 : vector<8x128xf32>
    %128 = vector.broadcast %90 : f32 to vector<8x128xf32>
    %129 = arith.mulf %128, %0 : vector<8x128xf32>
    %130 = arith.subf %127, %129 : vector<8x128xf32>
    %131 = vector.broadcast %89 : f32 to vector<8x128xf32>
    %132 = arith.mulf %131, %0 : vector<8x128xf32>
    %133 = vector.broadcast %90 : f32 to vector<8x128xf32>
    %134 = arith.mulf %133, %0 : vector<8x128xf32>
    %135 = arith.addf %132, %134 : vector<8x128xf32>
    %136 = vector.broadcast %89 : f32 to vector<8x128xf32>
    %137 = arith.mulf %136, %72 : vector<8x128xf32>
    %138 = vector.broadcast %90 : f32 to vector<8x128xf32>
    %139 = arith.mulf %138, %86 : vector<8x128xf32>
    %140 = arith.subf %137, %139 : vector<8x128xf32>
    %141 = vector.broadcast %89 : f32 to vector<8x128xf32>
    %142 = arith.mulf %141, %86 : vector<8x128xf32>
    %143 = vector.broadcast %90 : f32 to vector<8x128xf32>
    %144 = arith.mulf %143, %72 : vector<8x128xf32>
    %145 = arith.addf %142, %144 : vector<8x128xf32>
    %146 = vector.broadcast %89 : f32 to vector<8x128xf32>
    %147 = arith.mulf %146, %0 : vector<8x128xf32>
    %148 = vector.broadcast %90 : f32 to vector<8x128xf32>
    %149 = arith.mulf %148, %0 : vector<8x128xf32>
    %150 = arith.subf %147, %149 : vector<8x128xf32>
    %151 = vector.broadcast %89 : f32 to vector<8x128xf32>
    %152 = arith.mulf %151, %74 : vector<8x128xf32>
    %153 = vector.broadcast %90 : f32 to vector<8x128xf32>
    %154 = arith.mulf %153, %64 : vector<8x128xf32>
    %155 = arith.addf %152, %154 : vector<8x128xf32>
    %156 = vector.broadcast %89 : f32 to vector<8x128xf32>
    %157 = arith.mulf %156, %0 : vector<8x128xf32>
    %158 = vector.broadcast %90 : f32 to vector<8x128xf32>
    %159 = arith.mulf %158, %0 : vector<8x128xf32>
    %160 = arith.subf %157, %159 : vector<8x128xf32>
    %161 = vector.broadcast %89 : f32 to vector<8x128xf32>
    %162 = arith.mulf %161, %0 : vector<8x128xf32>
    %163 = vector.broadcast %90 : f32 to vector<8x128xf32>
    %164 = arith.mulf %163, %0 : vector<8x128xf32>
    %165 = arith.addf %162, %164 : vector<8x128xf32>
    %166 = vector.broadcast %89 : f32 to vector<8x128xf32>
    %167 = arith.mulf %166, %64 : vector<8x128xf32>
    %168 = vector.broadcast %90 : f32 to vector<8x128xf32>
    %169 = arith.mulf %168, %74 : vector<8x128xf32>
    %170 = arith.subf %167, %169 : vector<8x128xf32>
    %171 = vector.broadcast %89 : f32 to vector<8x128xf32>
    %172 = arith.mulf %171, %0 : vector<8x128xf32>
    %173 = vector.broadcast %90 : f32 to vector<8x128xf32>
    %174 = arith.mulf %173, %0 : vector<8x128xf32>
    %175 = arith.addf %172, %174 : vector<8x128xf32>
    %176 = vector.broadcast %89 : f32 to vector<8x128xf32>
    %177 = arith.mulf %176, %76 : vector<8x128xf32>
    %178 = vector.broadcast %90 : f32 to vector<8x128xf32>
    %179 = arith.mulf %178, %88 : vector<8x128xf32>
    %180 = arith.subf %177, %179 : vector<8x128xf32>
    %181 = vector.broadcast %89 : f32 to vector<8x128xf32>
    %182 = arith.mulf %181, %88 : vector<8x128xf32>
    %183 = vector.broadcast %90 : f32 to vector<8x128xf32>
    %184 = arith.mulf %183, %76 : vector<8x128xf32>
    %185 = arith.addf %182, %184 : vector<8x128xf32>
    %186 = vector.broadcast %89 : f32 to vector<8x128xf32>
    %187 = arith.mulf %186, %0 : vector<8x128xf32>
    %188 = vector.broadcast %90 : f32 to vector<8x128xf32>
    %189 = arith.mulf %188, %0 : vector<8x128xf32>
    %190 = arith.subf %187, %189 : vector<8x128xf32>
    %191 = vector.broadcast %89 : f32 to vector<8x128xf32>
    %192 = arith.mulf %191, %78 : vector<8x128xf32>
    %193 = vector.broadcast %90 : f32 to vector<8x128xf32>
    %194 = arith.mulf %193, %66 : vector<8x128xf32>
    %195 = arith.addf %192, %194 : vector<8x128xf32>
    %196 = vector.broadcast %89 : f32 to vector<8x128xf32>
    %197 = arith.mulf %196, %0 : vector<8x128xf32>
    %198 = vector.broadcast %90 : f32 to vector<8x128xf32>
    %199 = arith.mulf %198, %0 : vector<8x128xf32>
    %200 = arith.subf %197, %199 : vector<8x128xf32>
    %201 = vector.broadcast %89 : f32 to vector<8x128xf32>
    %202 = arith.mulf %201, %0 : vector<8x128xf32>
    %203 = vector.broadcast %90 : f32 to vector<8x128xf32>
    %204 = arith.mulf %203, %0 : vector<8x128xf32>
    %205 = arith.addf %202, %204 : vector<8x128xf32>
    %206 = vector.broadcast %89 : f32 to vector<8x128xf32>
    %207 = arith.mulf %206, %66 : vector<8x128xf32>
    %208 = vector.broadcast %90 : f32 to vector<8x128xf32>
    %209 = arith.mulf %208, %78 : vector<8x128xf32>
    %210 = arith.subf %207, %209 : vector<8x128xf32>
    %211 = vector.broadcast %89 : f32 to vector<8x128xf32>
    %212 = arith.mulf %211, %80 : vector<8x128xf32>
    %213 = vector.broadcast %90 : f32 to vector<8x128xf32>
    %214 = arith.mulf %213, %67 : vector<8x128xf32>
    %215 = arith.addf %212, %214 : vector<8x128xf32>
    %216 = vector.broadcast %89 : f32 to vector<8x128xf32>
    %217 = arith.mulf %216, %0 : vector<8x128xf32>
    %218 = vector.broadcast %90 : f32 to vector<8x128xf32>
    %219 = arith.mulf %218, %0 : vector<8x128xf32>
    %220 = arith.subf %217, %219 : vector<8x128xf32>
    %221 = vector.broadcast %89 : f32 to vector<8x128xf32>
    %222 = arith.mulf %221, %0 : vector<8x128xf32>
    %223 = vector.broadcast %90 : f32 to vector<8x128xf32>
    %224 = arith.mulf %223, %0 : vector<8x128xf32>
    %225 = arith.addf %222, %224 : vector<8x128xf32>
    %226 = vector.broadcast %89 : f32 to vector<8x128xf32>
    %227 = arith.mulf %226, %67 : vector<8x128xf32>
    %228 = vector.broadcast %90 : f32 to vector<8x128xf32>
    %229 = arith.mulf %228, %80 : vector<8x128xf32>
    %230 = arith.subf %227, %229 : vector<8x128xf32>
    %231 = vector.broadcast %89 : f32 to vector<8x128xf32>
    %232 = arith.mulf %231, %0 : vector<8x128xf32>
    %233 = vector.broadcast %90 : f32 to vector<8x128xf32>
    %234 = arith.mulf %233, %0 : vector<8x128xf32>
    %235 = arith.addf %232, %234 : vector<8x128xf32>
    %236 = vector.broadcast %89 : f32 to vector<8x128xf32>
    %237 = arith.mulf %236, %60 : vector<8x128xf32>
    %238 = vector.broadcast %90 : f32 to vector<8x128xf32>
    %239 = arith.mulf %238, %68 : vector<8x128xf32>
    %240 = arith.subf %237, %239 : vector<8x128xf32>
    %241 = vector.broadcast %89 : f32 to vector<8x128xf32>
    %242 = arith.mulf %241, %68 : vector<8x128xf32>
    %243 = vector.broadcast %90 : f32 to vector<8x128xf32>
    %244 = arith.mulf %243, %60 : vector<8x128xf32>
    %245 = arith.addf %242, %244 : vector<8x128xf32>
    %246 = vector.broadcast %89 : f32 to vector<8x128xf32>
    %247 = arith.mulf %246, %0 : vector<8x128xf32>
    %248 = vector.broadcast %90 : f32 to vector<8x128xf32>
    %249 = arith.mulf %248, %0 : vector<8x128xf32>
    %250 = arith.subf %247, %249 : vector<8x128xf32>
    %c1_39 = arith.constant 1 : index
    %251 = memref.load %arg1[%c1_39] : memref<8xf32, #tpu.memory_space<smem>>
    %c5 = arith.constant 5 : index
    %252 = memref.load %arg1[%c5] : memref<8xf32, #tpu.memory_space<smem>>
    %253 = vector.broadcast %251 : f32 to vector<8x128xf32>
    %254 = arith.mulf %253, %95 : vector<8x128xf32>
    %255 = vector.broadcast %252 : f32 to vector<8x128xf32>
    %256 = arith.mulf %255, %180 : vector<8x128xf32>
    %257 = arith.addf %254, %256 : vector<8x128xf32>
    %258 = vector.broadcast %251 : f32 to vector<8x128xf32>
    %259 = arith.mulf %258, %100 : vector<8x128xf32>
    %260 = vector.broadcast %252 : f32 to vector<8x128xf32>
    %261 = arith.mulf %260, %175 : vector<8x128xf32>
    %262 = arith.subf %259, %261 : vector<8x128xf32>
    %263 = vector.broadcast %251 : f32 to vector<8x128xf32>
    %264 = arith.mulf %263, %175 : vector<8x128xf32>
    %265 = vector.broadcast %252 : f32 to vector<8x128xf32>
    %266 = arith.mulf %265, %100 : vector<8x128xf32>
    %267 = arith.addf %264, %266 : vector<8x128xf32>
    %268 = vector.broadcast %251 : f32 to vector<8x128xf32>
    %269 = arith.mulf %268, %180 : vector<8x128xf32>
    %270 = vector.broadcast %252 : f32 to vector<8x128xf32>
    %271 = arith.mulf %270, %95 : vector<8x128xf32>
    %272 = arith.subf %269, %271 : vector<8x128xf32>
    %273 = vector.broadcast %251 : f32 to vector<8x128xf32>
    %274 = arith.mulf %273, %115 : vector<8x128xf32>
    %275 = vector.broadcast %252 : f32 to vector<8x128xf32>
    %276 = arith.mulf %275, %200 : vector<8x128xf32>
    %277 = arith.addf %274, %276 : vector<8x128xf32>
    %278 = vector.broadcast %251 : f32 to vector<8x128xf32>
    %279 = arith.mulf %278, %120 : vector<8x128xf32>
    %280 = vector.broadcast %252 : f32 to vector<8x128xf32>
    %281 = arith.mulf %280, %195 : vector<8x128xf32>
    %282 = arith.subf %279, %281 : vector<8x128xf32>
    %283 = vector.broadcast %251 : f32 to vector<8x128xf32>
    %284 = arith.mulf %283, %195 : vector<8x128xf32>
    %285 = vector.broadcast %252 : f32 to vector<8x128xf32>
    %286 = arith.mulf %285, %120 : vector<8x128xf32>
    %287 = arith.addf %284, %286 : vector<8x128xf32>
    %288 = vector.broadcast %251 : f32 to vector<8x128xf32>
    %289 = arith.mulf %288, %200 : vector<8x128xf32>
    %290 = vector.broadcast %252 : f32 to vector<8x128xf32>
    %291 = arith.mulf %290, %115 : vector<8x128xf32>
    %292 = arith.subf %289, %291 : vector<8x128xf32>
    %293 = vector.broadcast %251 : f32 to vector<8x128xf32>
    %294 = arith.mulf %293, %135 : vector<8x128xf32>
    %295 = vector.broadcast %252 : f32 to vector<8x128xf32>
    %296 = arith.mulf %295, %220 : vector<8x128xf32>
    %297 = arith.addf %294, %296 : vector<8x128xf32>
    %298 = vector.broadcast %251 : f32 to vector<8x128xf32>
    %299 = arith.mulf %298, %140 : vector<8x128xf32>
    %300 = vector.broadcast %252 : f32 to vector<8x128xf32>
    %301 = arith.mulf %300, %215 : vector<8x128xf32>
    %302 = arith.subf %299, %301 : vector<8x128xf32>
    %303 = vector.broadcast %251 : f32 to vector<8x128xf32>
    %304 = arith.mulf %303, %215 : vector<8x128xf32>
    %305 = vector.broadcast %252 : f32 to vector<8x128xf32>
    %306 = arith.mulf %305, %140 : vector<8x128xf32>
    %307 = arith.addf %304, %306 : vector<8x128xf32>
    %308 = vector.broadcast %251 : f32 to vector<8x128xf32>
    %309 = arith.mulf %308, %220 : vector<8x128xf32>
    %310 = vector.broadcast %252 : f32 to vector<8x128xf32>
    %311 = arith.mulf %310, %135 : vector<8x128xf32>
    %312 = arith.subf %309, %311 : vector<8x128xf32>
    %313 = vector.broadcast %251 : f32 to vector<8x128xf32>
    %314 = arith.mulf %313, %155 : vector<8x128xf32>
    %315 = vector.broadcast %252 : f32 to vector<8x128xf32>
    %316 = arith.mulf %315, %240 : vector<8x128xf32>
    %317 = arith.addf %314, %316 : vector<8x128xf32>
    %318 = vector.broadcast %251 : f32 to vector<8x128xf32>
    %319 = arith.mulf %318, %160 : vector<8x128xf32>
    %320 = vector.broadcast %252 : f32 to vector<8x128xf32>
    %321 = arith.mulf %320, %235 : vector<8x128xf32>
    %322 = arith.subf %319, %321 : vector<8x128xf32>
    %323 = vector.broadcast %251 : f32 to vector<8x128xf32>
    %324 = arith.mulf %323, %235 : vector<8x128xf32>
    %325 = vector.broadcast %252 : f32 to vector<8x128xf32>
    %326 = arith.mulf %325, %160 : vector<8x128xf32>
    %327 = arith.addf %324, %326 : vector<8x128xf32>
    %328 = vector.broadcast %251 : f32 to vector<8x128xf32>
    %329 = arith.mulf %328, %240 : vector<8x128xf32>
    %330 = vector.broadcast %252 : f32 to vector<8x128xf32>
    %331 = arith.mulf %330, %155 : vector<8x128xf32>
    %332 = arith.subf %329, %331 : vector<8x128xf32>
    %333 = vector.broadcast %251 : f32 to vector<8x128xf32>
    %334 = arith.mulf %333, %105 : vector<8x128xf32>
    %335 = vector.broadcast %252 : f32 to vector<8x128xf32>
    %336 = arith.mulf %335, %190 : vector<8x128xf32>
    %337 = arith.addf %334, %336 : vector<8x128xf32>
    %338 = vector.broadcast %251 : f32 to vector<8x128xf32>
    %339 = arith.mulf %338, %110 : vector<8x128xf32>
    %340 = vector.broadcast %252 : f32 to vector<8x128xf32>
    %341 = arith.mulf %340, %185 : vector<8x128xf32>
    %342 = arith.subf %339, %341 : vector<8x128xf32>
    %343 = vector.broadcast %251 : f32 to vector<8x128xf32>
    %344 = arith.mulf %343, %185 : vector<8x128xf32>
    %345 = vector.broadcast %252 : f32 to vector<8x128xf32>
    %346 = arith.mulf %345, %110 : vector<8x128xf32>
    %347 = arith.addf %344, %346 : vector<8x128xf32>
    %348 = vector.broadcast %251 : f32 to vector<8x128xf32>
    %349 = arith.mulf %348, %190 : vector<8x128xf32>
    %350 = vector.broadcast %252 : f32 to vector<8x128xf32>
    %351 = arith.mulf %350, %105 : vector<8x128xf32>
    %352 = arith.subf %349, %351 : vector<8x128xf32>
    %353 = vector.broadcast %251 : f32 to vector<8x128xf32>
    %354 = arith.mulf %353, %125 : vector<8x128xf32>
    %355 = vector.broadcast %252 : f32 to vector<8x128xf32>
    %356 = arith.mulf %355, %210 : vector<8x128xf32>
    %357 = arith.addf %354, %356 : vector<8x128xf32>
    %358 = vector.broadcast %251 : f32 to vector<8x128xf32>
    %359 = arith.mulf %358, %130 : vector<8x128xf32>
    %360 = vector.broadcast %252 : f32 to vector<8x128xf32>
    %361 = arith.mulf %360, %205 : vector<8x128xf32>
    %362 = arith.subf %359, %361 : vector<8x128xf32>
    %363 = vector.broadcast %251 : f32 to vector<8x128xf32>
    %364 = arith.mulf %363, %205 : vector<8x128xf32>
    %365 = vector.broadcast %252 : f32 to vector<8x128xf32>
    %366 = arith.mulf %365, %130 : vector<8x128xf32>
    %367 = arith.addf %364, %366 : vector<8x128xf32>
    %368 = vector.broadcast %251 : f32 to vector<8x128xf32>
    %369 = arith.mulf %368, %210 : vector<8x128xf32>
    %370 = vector.broadcast %252 : f32 to vector<8x128xf32>
    %371 = arith.mulf %370, %125 : vector<8x128xf32>
    %372 = arith.subf %369, %371 : vector<8x128xf32>
    %373 = vector.broadcast %251 : f32 to vector<8x128xf32>
    %374 = arith.mulf %373, %145 : vector<8x128xf32>
    %375 = vector.broadcast %252 : f32 to vector<8x128xf32>
    %376 = arith.mulf %375, %230 : vector<8x128xf32>
    %377 = arith.addf %374, %376 : vector<8x128xf32>
    %378 = vector.broadcast %251 : f32 to vector<8x128xf32>
    %379 = arith.mulf %378, %150 : vector<8x128xf32>
    %380 = vector.broadcast %252 : f32 to vector<8x128xf32>
    %381 = arith.mulf %380, %225 : vector<8x128xf32>
    %382 = arith.subf %379, %381 : vector<8x128xf32>
    %383 = vector.broadcast %251 : f32 to vector<8x128xf32>
    %384 = arith.mulf %383, %225 : vector<8x128xf32>
    %385 = vector.broadcast %252 : f32 to vector<8x128xf32>
    %386 = arith.mulf %385, %150 : vector<8x128xf32>
    %387 = arith.addf %384, %386 : vector<8x128xf32>
    %388 = vector.broadcast %251 : f32 to vector<8x128xf32>
    %389 = arith.mulf %388, %230 : vector<8x128xf32>
    %390 = vector.broadcast %252 : f32 to vector<8x128xf32>
    %391 = arith.mulf %390, %145 : vector<8x128xf32>
    %392 = arith.subf %389, %391 : vector<8x128xf32>
    %393 = vector.broadcast %251 : f32 to vector<8x128xf32>
    %394 = arith.mulf %393, %165 : vector<8x128xf32>
    %395 = vector.broadcast %252 : f32 to vector<8x128xf32>
    %396 = arith.mulf %395, %250 : vector<8x128xf32>
    %397 = arith.addf %394, %396 : vector<8x128xf32>
    %398 = vector.broadcast %251 : f32 to vector<8x128xf32>
    %399 = arith.mulf %398, %170 : vector<8x128xf32>
    %400 = vector.broadcast %252 : f32 to vector<8x128xf32>
    %401 = arith.mulf %400, %245 : vector<8x128xf32>
    %402 = arith.subf %399, %401 : vector<8x128xf32>
    %403 = vector.broadcast %251 : f32 to vector<8x128xf32>
    %404 = arith.mulf %403, %245 : vector<8x128xf32>
    %405 = vector.broadcast %252 : f32 to vector<8x128xf32>
    %406 = arith.mulf %405, %170 : vector<8x128xf32>
    %407 = arith.addf %404, %406 : vector<8x128xf32>
    %408 = vector.broadcast %251 : f32 to vector<8x128xf32>
    %409 = arith.mulf %408, %250 : vector<8x128xf32>
    %410 = vector.broadcast %252 : f32 to vector<8x128xf32>
    %411 = arith.mulf %410, %165 : vector<8x128xf32>
    %412 = arith.subf %409, %411 : vector<8x128xf32>
    %c2_40 = arith.constant 2 : index
    %413 = memref.load %arg1[%c2_40] : memref<8xf32, #tpu.memory_space<smem>>
    %c6 = arith.constant 6 : index
    %414 = memref.load %arg1[%c6] : memref<8xf32, #tpu.memory_space<smem>>
    %415 = vector.broadcast %413 : f32 to vector<8x128xf32>
    %416 = arith.mulf %415, %257 : vector<8x128xf32>
    %417 = vector.broadcast %414 : f32 to vector<8x128xf32>
    %418 = arith.mulf %417, %302 : vector<8x128xf32>
    %419 = arith.addf %416, %418 : vector<8x128xf32>
    %420 = vector.broadcast %413 : f32 to vector<8x128xf32>
    %421 = arith.mulf %420, %262 : vector<8x128xf32>
    %422 = vector.broadcast %414 : f32 to vector<8x128xf32>
    %423 = arith.mulf %422, %297 : vector<8x128xf32>
    %424 = arith.subf %421, %423 : vector<8x128xf32>
    %425 = vector.broadcast %413 : f32 to vector<8x128xf32>
    %426 = arith.mulf %425, %297 : vector<8x128xf32>
    %427 = vector.broadcast %414 : f32 to vector<8x128xf32>
    %428 = arith.mulf %427, %262 : vector<8x128xf32>
    %429 = arith.addf %426, %428 : vector<8x128xf32>
    %430 = vector.broadcast %413 : f32 to vector<8x128xf32>
    %431 = arith.mulf %430, %302 : vector<8x128xf32>
    %432 = vector.broadcast %414 : f32 to vector<8x128xf32>
    %433 = arith.mulf %432, %257 : vector<8x128xf32>
    %434 = arith.subf %431, %433 : vector<8x128xf32>
    %435 = vector.broadcast %413 : f32 to vector<8x128xf32>
    %436 = arith.mulf %435, %277 : vector<8x128xf32>
    %437 = vector.broadcast %414 : f32 to vector<8x128xf32>
    %438 = arith.mulf %437, %322 : vector<8x128xf32>
    %439 = arith.addf %436, %438 : vector<8x128xf32>
    %440 = vector.broadcast %413 : f32 to vector<8x128xf32>
    %441 = arith.mulf %440, %282 : vector<8x128xf32>
    %442 = vector.broadcast %414 : f32 to vector<8x128xf32>
    %443 = arith.mulf %442, %317 : vector<8x128xf32>
    %444 = arith.subf %441, %443 : vector<8x128xf32>
    %445 = vector.broadcast %413 : f32 to vector<8x128xf32>
    %446 = arith.mulf %445, %317 : vector<8x128xf32>
    %447 = vector.broadcast %414 : f32 to vector<8x128xf32>
    %448 = arith.mulf %447, %282 : vector<8x128xf32>
    %449 = arith.addf %446, %448 : vector<8x128xf32>
    %450 = vector.broadcast %413 : f32 to vector<8x128xf32>
    %451 = arith.mulf %450, %322 : vector<8x128xf32>
    %452 = vector.broadcast %414 : f32 to vector<8x128xf32>
    %453 = arith.mulf %452, %277 : vector<8x128xf32>
    %454 = arith.subf %451, %453 : vector<8x128xf32>
    %455 = vector.broadcast %413 : f32 to vector<8x128xf32>
    %456 = arith.mulf %455, %267 : vector<8x128xf32>
    %457 = vector.broadcast %414 : f32 to vector<8x128xf32>
    %458 = arith.mulf %457, %312 : vector<8x128xf32>
    %459 = arith.addf %456, %458 : vector<8x128xf32>
    %460 = vector.broadcast %413 : f32 to vector<8x128xf32>
    %461 = arith.mulf %460, %272 : vector<8x128xf32>
    %462 = vector.broadcast %414 : f32 to vector<8x128xf32>
    %463 = arith.mulf %462, %307 : vector<8x128xf32>
    %464 = arith.subf %461, %463 : vector<8x128xf32>
    %465 = vector.broadcast %413 : f32 to vector<8x128xf32>
    %466 = arith.mulf %465, %307 : vector<8x128xf32>
    %467 = vector.broadcast %414 : f32 to vector<8x128xf32>
    %468 = arith.mulf %467, %272 : vector<8x128xf32>
    %469 = arith.addf %466, %468 : vector<8x128xf32>
    %470 = vector.broadcast %413 : f32 to vector<8x128xf32>
    %471 = arith.mulf %470, %312 : vector<8x128xf32>
    %472 = vector.broadcast %414 : f32 to vector<8x128xf32>
    %473 = arith.mulf %472, %267 : vector<8x128xf32>
    %474 = arith.subf %471, %473 : vector<8x128xf32>
    %475 = vector.broadcast %413 : f32 to vector<8x128xf32>
    %476 = arith.mulf %475, %287 : vector<8x128xf32>
    %477 = vector.broadcast %414 : f32 to vector<8x128xf32>
    %478 = arith.mulf %477, %332 : vector<8x128xf32>
    %479 = arith.addf %476, %478 : vector<8x128xf32>
    %480 = vector.broadcast %413 : f32 to vector<8x128xf32>
    %481 = arith.mulf %480, %292 : vector<8x128xf32>
    %482 = vector.broadcast %414 : f32 to vector<8x128xf32>
    %483 = arith.mulf %482, %327 : vector<8x128xf32>
    %484 = arith.subf %481, %483 : vector<8x128xf32>
    %485 = vector.broadcast %413 : f32 to vector<8x128xf32>
    %486 = arith.mulf %485, %327 : vector<8x128xf32>
    %487 = vector.broadcast %414 : f32 to vector<8x128xf32>
    %488 = arith.mulf %487, %292 : vector<8x128xf32>
    %489 = arith.addf %486, %488 : vector<8x128xf32>
    %490 = vector.broadcast %413 : f32 to vector<8x128xf32>
    %491 = arith.mulf %490, %332 : vector<8x128xf32>
    %492 = vector.broadcast %414 : f32 to vector<8x128xf32>
    %493 = arith.mulf %492, %287 : vector<8x128xf32>
    %494 = arith.subf %491, %493 : vector<8x128xf32>
    %495 = vector.broadcast %413 : f32 to vector<8x128xf32>
    %496 = arith.mulf %495, %337 : vector<8x128xf32>
    %497 = vector.broadcast %414 : f32 to vector<8x128xf32>
    %498 = arith.mulf %497, %382 : vector<8x128xf32>
    %499 = arith.addf %496, %498 : vector<8x128xf32>
    %500 = vector.broadcast %413 : f32 to vector<8x128xf32>
    %501 = arith.mulf %500, %342 : vector<8x128xf32>
    %502 = vector.broadcast %414 : f32 to vector<8x128xf32>
    %503 = arith.mulf %502, %377 : vector<8x128xf32>
    %504 = arith.subf %501, %503 : vector<8x128xf32>
    %505 = vector.broadcast %413 : f32 to vector<8x128xf32>
    %506 = arith.mulf %505, %377 : vector<8x128xf32>
    %507 = vector.broadcast %414 : f32 to vector<8x128xf32>
    %508 = arith.mulf %507, %342 : vector<8x128xf32>
    %509 = arith.addf %506, %508 : vector<8x128xf32>
    %510 = vector.broadcast %413 : f32 to vector<8x128xf32>
    %511 = arith.mulf %510, %382 : vector<8x128xf32>
    %512 = vector.broadcast %414 : f32 to vector<8x128xf32>
    %513 = arith.mulf %512, %337 : vector<8x128xf32>
    %514 = arith.subf %511, %513 : vector<8x128xf32>
    %515 = vector.broadcast %413 : f32 to vector<8x128xf32>
    %516 = arith.mulf %515, %357 : vector<8x128xf32>
    %517 = vector.broadcast %414 : f32 to vector<8x128xf32>
    %518 = arith.mulf %517, %402 : vector<8x128xf32>
    %519 = arith.addf %516, %518 : vector<8x128xf32>
    %520 = vector.broadcast %413 : f32 to vector<8x128xf32>
    %521 = arith.mulf %520, %362 : vector<8x128xf32>
    %522 = vector.broadcast %414 : f32 to vector<8x128xf32>
    %523 = arith.mulf %522, %397 : vector<8x128xf32>
    %524 = arith.subf %521, %523 : vector<8x128xf32>
    %525 = vector.broadcast %413 : f32 to vector<8x128xf32>
    %526 = arith.mulf %525, %397 : vector<8x128xf32>
    %527 = vector.broadcast %414 : f32 to vector<8x128xf32>
    %528 = arith.mulf %527, %362 : vector<8x128xf32>
    %529 = arith.addf %526, %528 : vector<8x128xf32>
    %530 = vector.broadcast %413 : f32 to vector<8x128xf32>
    %531 = arith.mulf %530, %402 : vector<8x128xf32>
    %532 = vector.broadcast %414 : f32 to vector<8x128xf32>
    %533 = arith.mulf %532, %357 : vector<8x128xf32>
    %534 = arith.subf %531, %533 : vector<8x128xf32>
    %535 = vector.broadcast %413 : f32 to vector<8x128xf32>
    %536 = arith.mulf %535, %347 : vector<8x128xf32>
    %537 = vector.broadcast %414 : f32 to vector<8x128xf32>
    %538 = arith.mulf %537, %392 : vector<8x128xf32>
    %539 = arith.addf %536, %538 : vector<8x128xf32>
    %540 = vector.broadcast %413 : f32 to vector<8x128xf32>
    %541 = arith.mulf %540, %352 : vector<8x128xf32>
    %542 = vector.broadcast %414 : f32 to vector<8x128xf32>
    %543 = arith.mulf %542, %387 : vector<8x128xf32>
    %544 = arith.subf %541, %543 : vector<8x128xf32>
    %545 = vector.broadcast %413 : f32 to vector<8x128xf32>
    %546 = arith.mulf %545, %387 : vector<8x128xf32>
    %547 = vector.broadcast %414 : f32 to vector<8x128xf32>
    %548 = arith.mulf %547, %352 : vector<8x128xf32>
    %549 = arith.addf %546, %548 : vector<8x128xf32>
    %550 = vector.broadcast %413 : f32 to vector<8x128xf32>
    %551 = arith.mulf %550, %392 : vector<8x128xf32>
    %552 = vector.broadcast %414 : f32 to vector<8x128xf32>
    %553 = arith.mulf %552, %347 : vector<8x128xf32>
    %554 = arith.subf %551, %553 : vector<8x128xf32>
    %555 = vector.broadcast %413 : f32 to vector<8x128xf32>
    %556 = arith.mulf %555, %367 : vector<8x128xf32>
    %557 = vector.broadcast %414 : f32 to vector<8x128xf32>
    %558 = arith.mulf %557, %412 : vector<8x128xf32>
    %559 = arith.addf %556, %558 : vector<8x128xf32>
    %560 = vector.broadcast %413 : f32 to vector<8x128xf32>
    %561 = arith.mulf %560, %372 : vector<8x128xf32>
    %562 = vector.broadcast %414 : f32 to vector<8x128xf32>
    %563 = arith.mulf %562, %407 : vector<8x128xf32>
    %564 = arith.subf %561, %563 : vector<8x128xf32>
    %565 = vector.broadcast %413 : f32 to vector<8x128xf32>
    %566 = arith.mulf %565, %407 : vector<8x128xf32>
    %567 = vector.broadcast %414 : f32 to vector<8x128xf32>
    %568 = arith.mulf %567, %372 : vector<8x128xf32>
    %569 = arith.addf %566, %568 : vector<8x128xf32>
    %570 = vector.broadcast %413 : f32 to vector<8x128xf32>
    %571 = arith.mulf %570, %412 : vector<8x128xf32>
    %572 = vector.broadcast %414 : f32 to vector<8x128xf32>
    %573 = arith.mulf %572, %367 : vector<8x128xf32>
    %574 = arith.subf %571, %573 : vector<8x128xf32>
    %c3_41 = arith.constant 3 : index
    %575 = memref.load %arg1[%c3_41] : memref<8xf32, #tpu.memory_space<smem>>
    %c7 = arith.constant 7 : index
    %576 = memref.load %arg1[%c7] : memref<8xf32, #tpu.memory_space<smem>>
    %577 = vector.broadcast %575 : f32 to vector<8x128xf32>
    %578 = arith.mulf %577, %419 : vector<8x128xf32>
    %579 = vector.broadcast %576 : f32 to vector<8x128xf32>
    %580 = arith.mulf %579, %444 : vector<8x128xf32>
    %581 = arith.addf %578, %580 : vector<8x128xf32>
    %582 = vector.broadcast %575 : f32 to vector<8x128xf32>
    %583 = arith.mulf %582, %424 : vector<8x128xf32>
    %584 = vector.broadcast %576 : f32 to vector<8x128xf32>
    %585 = arith.mulf %584, %439 : vector<8x128xf32>
    %586 = arith.subf %583, %585 : vector<8x128xf32>
    %587 = vector.broadcast %575 : f32 to vector<8x128xf32>
    %588 = arith.mulf %587, %439 : vector<8x128xf32>
    %589 = vector.broadcast %576 : f32 to vector<8x128xf32>
    %590 = arith.mulf %589, %424 : vector<8x128xf32>
    %591 = arith.addf %588, %590 : vector<8x128xf32>
    %592 = vector.broadcast %575 : f32 to vector<8x128xf32>
    %593 = arith.mulf %592, %444 : vector<8x128xf32>
    %594 = vector.broadcast %576 : f32 to vector<8x128xf32>
    %595 = arith.mulf %594, %419 : vector<8x128xf32>
    %596 = arith.subf %593, %595 : vector<8x128xf32>
    %597 = vector.broadcast %575 : f32 to vector<8x128xf32>
    %598 = arith.mulf %597, %429 : vector<8x128xf32>
    %599 = vector.broadcast %576 : f32 to vector<8x128xf32>
    %600 = arith.mulf %599, %454 : vector<8x128xf32>
    %601 = arith.addf %598, %600 : vector<8x128xf32>
    %602 = vector.broadcast %575 : f32 to vector<8x128xf32>
    %603 = arith.mulf %602, %434 : vector<8x128xf32>
    %604 = vector.broadcast %576 : f32 to vector<8x128xf32>
    %605 = arith.mulf %604, %449 : vector<8x128xf32>
    %606 = arith.subf %603, %605 : vector<8x128xf32>
    %607 = vector.broadcast %575 : f32 to vector<8x128xf32>
    %608 = arith.mulf %607, %449 : vector<8x128xf32>
    %609 = vector.broadcast %576 : f32 to vector<8x128xf32>
    %610 = arith.mulf %609, %434 : vector<8x128xf32>
    %611 = arith.addf %608, %610 : vector<8x128xf32>
    %612 = vector.broadcast %575 : f32 to vector<8x128xf32>
    %613 = arith.mulf %612, %454 : vector<8x128xf32>
    %614 = vector.broadcast %576 : f32 to vector<8x128xf32>
    %615 = arith.mulf %614, %429 : vector<8x128xf32>
    %616 = arith.subf %613, %615 : vector<8x128xf32>
    %617 = vector.broadcast %575 : f32 to vector<8x128xf32>
    %618 = arith.mulf %617, %459 : vector<8x128xf32>
    %619 = vector.broadcast %576 : f32 to vector<8x128xf32>
    %620 = arith.mulf %619, %484 : vector<8x128xf32>
    %621 = arith.addf %618, %620 : vector<8x128xf32>
    %622 = vector.broadcast %575 : f32 to vector<8x128xf32>
    %623 = arith.mulf %622, %464 : vector<8x128xf32>
    %624 = vector.broadcast %576 : f32 to vector<8x128xf32>
    %625 = arith.mulf %624, %479 : vector<8x128xf32>
    %626 = arith.subf %623, %625 : vector<8x128xf32>
    %627 = vector.broadcast %575 : f32 to vector<8x128xf32>
    %628 = arith.mulf %627, %479 : vector<8x128xf32>
    %629 = vector.broadcast %576 : f32 to vector<8x128xf32>
    %630 = arith.mulf %629, %464 : vector<8x128xf32>
    %631 = arith.addf %628, %630 : vector<8x128xf32>
    %632 = vector.broadcast %575 : f32 to vector<8x128xf32>
    %633 = arith.mulf %632, %484 : vector<8x128xf32>
    %634 = vector.broadcast %576 : f32 to vector<8x128xf32>
    %635 = arith.mulf %634, %459 : vector<8x128xf32>
    %636 = arith.subf %633, %635 : vector<8x128xf32>
    %637 = vector.broadcast %575 : f32 to vector<8x128xf32>
    %638 = arith.mulf %637, %469 : vector<8x128xf32>
    %639 = vector.broadcast %576 : f32 to vector<8x128xf32>
    %640 = arith.mulf %639, %494 : vector<8x128xf32>
    %641 = arith.addf %638, %640 : vector<8x128xf32>
    %642 = vector.broadcast %575 : f32 to vector<8x128xf32>
    %643 = arith.mulf %642, %474 : vector<8x128xf32>
    %644 = vector.broadcast %576 : f32 to vector<8x128xf32>
    %645 = arith.mulf %644, %489 : vector<8x128xf32>
    %646 = arith.subf %643, %645 : vector<8x128xf32>
    %647 = vector.broadcast %575 : f32 to vector<8x128xf32>
    %648 = arith.mulf %647, %489 : vector<8x128xf32>
    %649 = vector.broadcast %576 : f32 to vector<8x128xf32>
    %650 = arith.mulf %649, %474 : vector<8x128xf32>
    %651 = arith.addf %648, %650 : vector<8x128xf32>
    %652 = vector.broadcast %575 : f32 to vector<8x128xf32>
    %653 = arith.mulf %652, %494 : vector<8x128xf32>
    %654 = vector.broadcast %576 : f32 to vector<8x128xf32>
    %655 = arith.mulf %654, %469 : vector<8x128xf32>
    %656 = arith.subf %653, %655 : vector<8x128xf32>
    %657 = vector.broadcast %575 : f32 to vector<8x128xf32>
    %658 = arith.mulf %657, %499 : vector<8x128xf32>
    %659 = vector.broadcast %576 : f32 to vector<8x128xf32>
    %660 = arith.mulf %659, %524 : vector<8x128xf32>
    %661 = arith.addf %658, %660 : vector<8x128xf32>
    %662 = vector.broadcast %575 : f32 to vector<8x128xf32>
    %663 = arith.mulf %662, %504 : vector<8x128xf32>
    %664 = vector.broadcast %576 : f32 to vector<8x128xf32>
    %665 = arith.mulf %664, %519 : vector<8x128xf32>
    %666 = arith.subf %663, %665 : vector<8x128xf32>
    %667 = vector.broadcast %575 : f32 to vector<8x128xf32>
    %668 = arith.mulf %667, %519 : vector<8x128xf32>
    %669 = vector.broadcast %576 : f32 to vector<8x128xf32>
    %670 = arith.mulf %669, %504 : vector<8x128xf32>
    %671 = arith.addf %668, %670 : vector<8x128xf32>
    %672 = vector.broadcast %575 : f32 to vector<8x128xf32>
    %673 = arith.mulf %672, %524 : vector<8x128xf32>
    %674 = vector.broadcast %576 : f32 to vector<8x128xf32>
    %675 = arith.mulf %674, %499 : vector<8x128xf32>
    %676 = arith.subf %673, %675 : vector<8x128xf32>
    %677 = vector.broadcast %575 : f32 to vector<8x128xf32>
    %678 = arith.mulf %677, %509 : vector<8x128xf32>
    %679 = vector.broadcast %576 : f32 to vector<8x128xf32>
    %680 = arith.mulf %679, %534 : vector<8x128xf32>
    %681 = arith.addf %678, %680 : vector<8x128xf32>
    %682 = vector.broadcast %575 : f32 to vector<8x128xf32>
    %683 = arith.mulf %682, %514 : vector<8x128xf32>
    %684 = vector.broadcast %576 : f32 to vector<8x128xf32>
    %685 = arith.mulf %684, %529 : vector<8x128xf32>
    %686 = arith.subf %683, %685 : vector<8x128xf32>
    %687 = vector.broadcast %575 : f32 to vector<8x128xf32>
    %688 = arith.mulf %687, %529 : vector<8x128xf32>
    %689 = vector.broadcast %576 : f32 to vector<8x128xf32>
    %690 = arith.mulf %689, %514 : vector<8x128xf32>
    %691 = arith.addf %688, %690 : vector<8x128xf32>
    %692 = vector.broadcast %575 : f32 to vector<8x128xf32>
    %693 = arith.mulf %692, %534 : vector<8x128xf32>
    %694 = vector.broadcast %576 : f32 to vector<8x128xf32>
    %695 = arith.mulf %694, %509 : vector<8x128xf32>
    %696 = arith.subf %693, %695 : vector<8x128xf32>
    %697 = vector.broadcast %575 : f32 to vector<8x128xf32>
    %698 = arith.mulf %697, %539 : vector<8x128xf32>
    %699 = vector.broadcast %576 : f32 to vector<8x128xf32>
    %700 = arith.mulf %699, %564 : vector<8x128xf32>
    %701 = arith.addf %698, %700 : vector<8x128xf32>
    %702 = vector.broadcast %575 : f32 to vector<8x128xf32>
    %703 = arith.mulf %702, %544 : vector<8x128xf32>
    %704 = vector.broadcast %576 : f32 to vector<8x128xf32>
    %705 = arith.mulf %704, %559 : vector<8x128xf32>
    %706 = arith.subf %703, %705 : vector<8x128xf32>
    %707 = vector.broadcast %575 : f32 to vector<8x128xf32>
    %708 = arith.mulf %707, %559 : vector<8x128xf32>
    %709 = vector.broadcast %576 : f32 to vector<8x128xf32>
    %710 = arith.mulf %709, %544 : vector<8x128xf32>
    %711 = arith.addf %708, %710 : vector<8x128xf32>
    %712 = vector.broadcast %575 : f32 to vector<8x128xf32>
    %713 = arith.mulf %712, %564 : vector<8x128xf32>
    %714 = vector.broadcast %576 : f32 to vector<8x128xf32>
    %715 = arith.mulf %714, %539 : vector<8x128xf32>
    %716 = arith.subf %713, %715 : vector<8x128xf32>
    %717 = vector.broadcast %575 : f32 to vector<8x128xf32>
    %718 = arith.mulf %717, %549 : vector<8x128xf32>
    %719 = vector.broadcast %576 : f32 to vector<8x128xf32>
    %720 = arith.mulf %719, %574 : vector<8x128xf32>
    %721 = arith.addf %718, %720 : vector<8x128xf32>
    %722 = vector.broadcast %575 : f32 to vector<8x128xf32>
    %723 = arith.mulf %722, %554 : vector<8x128xf32>
    %724 = vector.broadcast %576 : f32 to vector<8x128xf32>
    %725 = arith.mulf %724, %569 : vector<8x128xf32>
    %726 = arith.subf %723, %725 : vector<8x128xf32>
    %727 = vector.broadcast %575 : f32 to vector<8x128xf32>
    %728 = arith.mulf %727, %569 : vector<8x128xf32>
    %729 = vector.broadcast %576 : f32 to vector<8x128xf32>
    %730 = arith.mulf %729, %554 : vector<8x128xf32>
    %731 = arith.addf %728, %730 : vector<8x128xf32>
    %732 = vector.broadcast %575 : f32 to vector<8x128xf32>
    %733 = arith.mulf %732, %574 : vector<8x128xf32>
    %734 = vector.broadcast %576 : f32 to vector<8x128xf32>
    %735 = arith.mulf %734, %549 : vector<8x128xf32>
    %736 = arith.subf %733, %735 : vector<8x128xf32>
    %737 = arith.mulf %581, %581 : vector<8x128xf32>
    %738 = arith.mulf %586, %586 : vector<8x128xf32>
    %739 = arith.addf %737, %738 : vector<8x128xf32>
    %740 = arith.mulf %711, %711 : vector<8x128xf32>
    %741 = arith.mulf %716, %716 : vector<8x128xf32>
    %742 = arith.addf %740, %741 : vector<8x128xf32>
    %743 = arith.mulf %611, %611 : vector<8x128xf32>
    %744 = arith.mulf %616, %616 : vector<8x128xf32>
    %745 = arith.addf %743, %744 : vector<8x128xf32>
    %746 = arith.mulf %721, %721 : vector<8x128xf32>
    %747 = arith.mulf %726, %726 : vector<8x128xf32>
    %748 = arith.addf %746, %747 : vector<8x128xf32>
    %749 = arith.mulf %641, %641 : vector<8x128xf32>
    %750 = arith.mulf %646, %646 : vector<8x128xf32>
    %751 = arith.addf %749, %750 : vector<8x128xf32>
    %752 = arith.mulf %691, %691 : vector<8x128xf32>
    %753 = arith.mulf %696, %696 : vector<8x128xf32>
    %754 = arith.addf %752, %753 : vector<8x128xf32>
    %755 = arith.mulf %631, %631 : vector<8x128xf32>
    %756 = arith.mulf %636, %636 : vector<8x128xf32>
    %757 = arith.addf %755, %756 : vector<8x128xf32>
    %758 = arith.mulf %661, %661 : vector<8x128xf32>
    %759 = arith.mulf %666, %666 : vector<8x128xf32>
    %760 = arith.addf %758, %759 : vector<8x128xf32>
    %761 = arith.mulf %701, %701 : vector<8x128xf32>
    %762 = arith.mulf %706, %706 : vector<8x128xf32>
    %763 = arith.addf %761, %762 : vector<8x128xf32>
    %764 = arith.mulf %591, %591 : vector<8x128xf32>
    %765 = arith.mulf %596, %596 : vector<8x128xf32>
    %766 = arith.addf %764, %765 : vector<8x128xf32>
    %767 = arith.mulf %731, %731 : vector<8x128xf32>
    %768 = arith.mulf %736, %736 : vector<8x128xf32>
    %769 = arith.addf %767, %768 : vector<8x128xf32>
    %770 = arith.mulf %601, %601 : vector<8x128xf32>
    %771 = arith.mulf %606, %606 : vector<8x128xf32>
    %772 = arith.addf %770, %771 : vector<8x128xf32>
    %773 = arith.mulf %681, %681 : vector<8x128xf32>
    %774 = arith.mulf %686, %686 : vector<8x128xf32>
    %775 = arith.addf %773, %774 : vector<8x128xf32>
    %776 = arith.mulf %651, %651 : vector<8x128xf32>
    %777 = arith.mulf %656, %656 : vector<8x128xf32>
    %778 = arith.addf %776, %777 : vector<8x128xf32>
    %779 = arith.mulf %671, %671 : vector<8x128xf32>
    %780 = arith.mulf %676, %676 : vector<8x128xf32>
    %781 = arith.addf %779, %780 : vector<8x128xf32>
    %782 = arith.mulf %621, %621 : vector<8x128xf32>
    %783 = arith.mulf %626, %626 : vector<8x128xf32>
    %784 = arith.addf %782, %783 : vector<8x128xf32>
    %785 = arith.addf %739, %742 : vector<8x128xf32>
    %786 = arith.addf %785, %745 : vector<8x128xf32>
    %787 = arith.addf %786, %748 : vector<8x128xf32>
    %788 = arith.addf %787, %751 : vector<8x128xf32>
    %789 = arith.addf %788, %754 : vector<8x128xf32>
    %790 = arith.addf %789, %757 : vector<8x128xf32>
    %791 = arith.addf %790, %760 : vector<8x128xf32>
    %792 = arith.addf %763, %766 : vector<8x128xf32>
    %793 = arith.addf %792, %769 : vector<8x128xf32>
    %794 = arith.addf %793, %772 : vector<8x128xf32>
    %795 = arith.addf %794, %775 : vector<8x128xf32>
    %796 = arith.addf %795, %778 : vector<8x128xf32>
    %797 = arith.addf %796, %781 : vector<8x128xf32>
    %798 = arith.addf %797, %784 : vector<8x128xf32>
    %799 = arith.subf %791, %798 : vector<8x128xf32>
    %c0_42 = arith.constant 0 : index
    %c0_43 = arith.constant 0 : index
    %c0_44 = arith.constant 0 : index
    %800 = vector.load %arg3[%c0_42, %c0_43, %c0_44] : memref<4x8x128xf32, #tpu.memory_space<vmem>>, vector<1x8x128xf32>
    %801 = vector.shape_cast %800 : vector<1x8x128xf32> to vector<8x128xf32>
    %802 = vector.shape_cast %799 : vector<8x128xf32> to vector<1x8x128xf32>
    tpu.vector_store %arg3[%c0_42, %c0_43, %c0_44], %802 {strides = array<i32>} : memref<4x8x128xf32, #tpu.memory_space<vmem>>, vector<1x8x128xf32>,
    %803 = arith.addf %739, %742 : vector<8x128xf32>
    %804 = arith.addf %803, %745 : vector<8x128xf32>
    %805 = arith.addf %804, %748 : vector<8x128xf32>
    %806 = arith.addf %751, %754 : vector<8x128xf32>
    %807 = arith.addf %806, %757 : vector<8x128xf32>
    %808 = arith.addf %807, %760 : vector<8x128xf32>
    %809 = arith.addf %805, %763 : vector<8x128xf32>
    %810 = arith.addf %809, %766 : vector<8x128xf32>
    %811 = arith.addf %810, %769 : vector<8x128xf32>
    %812 = arith.addf %811, %772 : vector<8x128xf32>
    %813 = arith.addf %808, %775 : vector<8x128xf32>
    %814 = arith.addf %813, %778 : vector<8x128xf32>
    %815 = arith.addf %814, %781 : vector<8x128xf32>
    %816 = arith.addf %815, %784 : vector<8x128xf32>
    %817 = arith.subf %812, %816 : vector<8x128xf32>
    %c1_45 = arith.constant 1 : index
    %c0_46 = arith.constant 0 : index
    %c0_47 = arith.constant 0 : index
    %818 = vector.load %arg3[%c1_45, %c0_46, %c0_47] : memref<4x8x128xf32, #tpu.memory_space<vmem>>, vector<1x8x128xf32>
    %819 = vector.shape_cast %818 : vector<1x8x128xf32> to vector<8x128xf32>
    %820 = vector.shape_cast %817 : vector<8x128xf32> to vector<1x8x128xf32>
    tpu.vector_store %arg3[%c1_45, %c0_46, %c0_47], %820 {strides = array<i32>} : memref<4x8x128xf32, #tpu.memory_space<vmem>>, vector<1x8x128xf32>,
    %821 = arith.addf %739, %742 : vector<8x128xf32>
    %822 = arith.addf %745, %748 : vector<8x128xf32>
    %823 = arith.addf %821, %751 : vector<8x128xf32>
    %824 = arith.addf %823, %754 : vector<8x128xf32>
    %825 = arith.addf %822, %757 : vector<8x128xf32>
    %826 = arith.addf %825, %760 : vector<8x128xf32>
    %827 = arith.addf %824, %763 : vector<8x128xf32>
    %828 = arith.addf %827, %766 : vector<8x128xf32>
    %829 = arith.addf %826, %769 : vector<8x128xf32>
    %830 = arith.addf %829, %772 : vector<8x128xf32>
    %831 = arith.addf %828, %775 : vector<8x128xf32>
    %832 = arith.addf %831, %778 : vector<8x128xf32>
    %833 = arith.addf %830, %781 : vector<8x128xf32>
    %834 = arith.addf %833, %784 : vector<8x128xf32>
    %835 = arith.subf %832, %834 : vector<8x128xf32>
    %c2_48 = arith.constant 2 : index
    %c0_49 = arith.constant 0 : index
    %c0_50 = arith.constant 0 : index
    %836 = vector.load %arg3[%c2_48, %c0_49, %c0_50] : memref<4x8x128xf32, #tpu.memory_space<vmem>>, vector<1x8x128xf32>
    %837 = vector.shape_cast %836 : vector<1x8x128xf32> to vector<8x128xf32>
    %838 = vector.shape_cast %835 : vector<8x128xf32> to vector<1x8x128xf32>
    tpu.vector_store %arg3[%c2_48, %c0_49, %c0_50], %838 {strides = array<i32>} : memref<4x8x128xf32, #tpu.memory_space<vmem>>, vector<1x8x128xf32>,
    %839 = arith.addf %739, %745 : vector<8x128xf32>
    %840 = arith.addf %742, %748 : vector<8x128xf32>
    %841 = arith.addf %839, %751 : vector<8x128xf32>
    %842 = arith.addf %840, %754 : vector<8x128xf32>
    %843 = arith.addf %841, %757 : vector<8x128xf32>
    %844 = arith.addf %842, %760 : vector<8x128xf32>
    %845 = arith.addf %843, %763 : vector<8x128xf32>
    %846 = arith.addf %844, %766 : vector<8x128xf32>
    %847 = arith.addf %845, %769 : vector<8x128xf32>
    %848 = arith.addf %846, %772 : vector<8x128xf32>
    %849 = arith.addf %847, %775 : vector<8x128xf32>
    %850 = arith.addf %848, %778 : vector<8x128xf32>
    %851 = arith.addf %849, %781 : vector<8x128xf32>
    %852 = arith.addf %850, %784 : vector<8x128xf32>
    %853 = arith.subf %851, %852 : vector<8x128xf32>
    %c3_51 = arith.constant 3 : index
    %c0_52 = arith.constant 0 : index
    %c0_53 = arith.constant 0 : index
    %854 = vector.load %arg3[%c3_51, %c0_52, %c0_53] : memref<4x8x128xf32, #tpu.memory_space<vmem>>, vector<1x8x128xf32>
    %855 = vector.shape_cast %854 : vector<1x8x128xf32> to vector<8x128xf32>
    %856 = vector.shape_cast %853 : vector<8x128xf32> to vector<1x8x128xf32>
    tpu.vector_store %arg3[%c3_51, %c0_52, %c0_53], %856 {strides = array<i32>} : memref<4x8x128xf32, #tpu.memory_space<vmem>>, vector<1x8x128xf32>,
    return
  }
  func.func @transform_0(%arg0: i32) -> i32 {
    %c0_i32 = arith.constant 0 : i32
    %c0_i32_0 = arith.constant 0 : i32
    return %c0_i32 : i32
  }
  func.func @transform_1(%arg0: i32) -> (i32, i32, i32) {
    %c0_i32 = arith.constant 0 : i32
    %c0_i32_0 = arith.constant 0 : i32
    %c0_i32_1 = arith.constant 0 : i32
    return %c0_i32, %arg0, %c0_i32_0 : i32, i32, i32
  }
  func.func @transform_2(%arg0: i32) -> (i32, i32, i32) {
    %c0_i32 = arith.constant 0 : i32
    %c0_i32_0 = arith.constant 0 : i32
    %c0_i32_1 = arith.constant 0 : i32
    return %c0_i32, %arg0, %c0_i32_0 : i32, i32, i32
  }
}

</mosaic_0001>

<llo_original>
// kernel: quanv2d_forward.1
$region0: #{quanv2d_forward.1}
  #allocation0 [shape = 'u32[]', space=smem, size = 0x4, offset = 0x4, fixed_abs, tag = 'smem constant byte address 0x4 - core index']
  #allocation1 [shape = 'u32[72,128]{1,0:T(1,128)}', space=vmem, size = 0x9000, scoped, tag = 'internal scratch']
  %s0 = inlined_call_operand.vmem [shape: f32[8], index: 0, kind: input, shape index: {}]
  %s1 = inlined_call_operand.vmem [shape: f32[4,8,128], index: 1, kind: input, shape index: {}]
  %s2 = inlined_call_operand.vmem [shape: f32[4,8,128], index: 2, kind: output, shape index: {}]
  %s3 = sld [smem:[#allocation0]]
  $region22: #{quanv2d_forward.1} parent=0
    _
  %s5 = ssub.s32 1, %s3
  %s6 = scalar_select 0, %s5, %s3
  $region1: #{quanv2d_forward.1} parent=0
    #allocation2 [shape = 'u8[512]{0}', space=smem, size = 0x200, scoped, tag = 'input window, operand 0, single buffered']
    #allocation3 [shape = 's32[1]{0}', space=sflag, size = 0x4, scoped, tag = 'scoped memory for quanv2d_forward.1']
    %7 = vsyncpa [#allocation3], 0
    // Predicated region
    $region2: #{quanv2d_forward.1} parent=1 // pred_check
      _
    $region3: #{quanv2d_forward.1} parent=1 // pred_check_branch
      %9 = sbr.rel (0) target = $region5
    $region4: #{quanv2d_forward.1} parent=1 // pred_region
      %11 = vsyncadd [#allocation3], 0
      %s13 = sshll.u32 %s0, 4
      %s14 = int_to_ptr.vmem [resolvable:$true] %s13
      %16 = dma.vmem_to_smem %s14, 16, [#allocation2], [#allocation3]
    $region5: #{quanv2d_forward.1} parent=1 // pred_fallthru
      _
    // Predicated region
    $region6: #{quanv2d_forward.1} parent=1 // pred_check
      _
    $region7: #{quanv2d_forward.1} parent=1 // pred_check_branch
      %18 = sbr.rel (0) target = $region9
    $region8: #{quanv2d_forward.1} parent=1 // pred_region
      _
    $region9: #{quanv2d_forward.1} parent=1 // pred_fallthru
      _
    // Predicated region
    $region10: #{quanv2d_forward.1} parent=1 // pred_check
      _
    $region11: #{quanv2d_forward.1} parent=1 // pred_check_branch
      %20 = sbr.rel (0) target = $region13
    $region12: #{quanv2d_forward.1} parent=1 // pred_region
      %22 = dma.done [#allocation3], 16
    $region13: #{quanv2d_forward.1} parent=1 // pred_fallthru
      _
    %23 = sfence
    %v24 = vld [vmem:[%s1] sm:$0xff]
    %v25 = vmul.f32 %v24, 0.5
    %v26 = vand.u32 2147483647, %v25
    %vm27 = vcmp.le.f32.partialorder %v26, 0.7853982
    %vm28 = vcmp.lt.s32.totalorder %v25, 0
    %v29 = vand.u32 %v25, 2139095040
    %v30 = vshrl.u32 %v29, 23
    %v31 = vsub.s32 %v30, 127
    %v32 = vand.u32 2147483647, %v25
    %v33 = vand.u32 %v32, 8388607
    %v34 = vor.u32 %v33, 8388608
    %v35 = vsub.s32 0, %v34
    %v36 = vadd.s32 %v31, 1
    %vm37 = vcmp.gt.s32.totalorder %v36, 0
    %v38 = vsel %vm37, %v36, 0
    %v39 = vshrl.u32 %v38, 5
    %v40 = vand.u32 %v38, 31
    %v41 = vsub.s32 32, %v40
    %v42 = vshrl.u32 683565275, %v41
    %v43 = vshll.u32 683565275, %v40
    %v44 = vshrl.u32 2475754826, %v41
    %v45 = vor.u32 %v43, %v44
    %v46 = vshll.u32 2475754826, %v40
    %v47 = vshrl.u32 2131351028, %v41
    %v48 = vor.u32 %v46, %v47
    %v49 = vshll.u32 2131351028, %v40
    %v50 = vshrl.u32 2102212464, %v41
    %v51 = vor.u32 %v49, %v50
    %v52 = vshll.u32 2102212464, %v40
    %v53 = vshrl.u32 920167782, %v41
    %v54 = vor.u32 %v52, %v53
    %v55 = vshll.u32 920167782, %v40
    %v56 = vshrl.u32 1326507024, %v41
    %v57 = vor.u32 %v55, %v56
    %vm58 = vcmp.lt.s32.totalorder %v39, 1
    %vm59 = vcmp.lt.s32.totalorder %v39, 2
    %vm60 = vcmp.lt.s32.totalorder %v39, 3
    %vm61 = vcmp.lt.s32.totalorder %v39, 4
    %v62 = vsel %vm58, %v42, %v45
    %v63 = vsel %vm61, %v51, 2102212464
    %v64 = vsel %vm60, %v48, %v63
    %v65 = vsel %vm59, %v62, %v64
    %v66 = vsel %vm58, %v45, %v48
    %v67 = vsel %vm61, %v54, 920167782
    %v68 = vsel %vm60, %v51, %v67
    %v69 = vsel %vm59, %v66, %v68
    %v70 = vsel %vm58, %v48, %v51
    %v71 = vsel %vm61, %v57, 1326507024
    %v72 = vsel %vm60, %v54, %v71
    %v73 = vsel %vm59, %v70, %v72
    %v74 = vshll.u32 %v34, 8
    %v75 = vand.u32 %v74, 65535
    %v76 = vshrl.u32 %v74, 16
    %v77 = vand.u32 %v73, 65535
    %v78 = vshrl.u32 %v73, 16
    %v79 = vmul.u32 %v75, %v77
    %v80 = vmul.u32 %v75, %v78
    %v81 = vmul.u32 %v76, %v77
    %v82 = vmul.u32 %v76, %v78
    %v83 = vshll.u32 %v80, 16
    %v84 = vshrl.u32 %v80, 16
    %v85 = vshll.u32 %v81, 16
    %v86 = vshrl.u32 %v81, 16
    %vm87 = vc.u32 %v79, %v83
    %v88 = vsel %vm87, 1, 0
    %v89 = vadd.s32 %v79, %v83
    %v90 = vadd.s32 %v82, %v88
    %vm91 = vc.u32 %v89, %v85
    %v92 = vsel %vm91, 1, 0
    %v93 = vadd.s32 %v89, %v85
    %v94 = vadd.s32 %v90, %v92
    %v95 = vadd.s32 %v94, %v84
    %v96 = vadd.s32 %v95, %v86
    %v97 = vand.u32 %v74, 65535
    %v98 = vshrl.u32 %v74, 16
    %v99 = vand.u32 %v69, 65535
    %v100 = vshrl.u32 %v69, 16
    %v101 = vmul.u32 %v97, %v99
    %v102 = vmul.u32 %v97, %v100
    %v103 = vmul.u32 %v98, %v99
    %v104 = vmul.u32 %v98, %v100
    %v105 = vshll.u32 %v102, 16
    %v106 = vshrl.u32 %v102, 16
    %v107 = vshll.u32 %v103, 16
    %v108 = vshrl.u32 %v103, 16
    %vm109 = vc.u32 %v101, %v105
    %v110 = vsel %vm109, 1, 0
    %v111 = vadd.s32 %v101, %v105
    %v112 = vadd.s32 %v104, %v110
    %vm113 = vc.u32 %v111, %v107
    %v114 = vsel %vm113, 1, 0
    %v115 = vadd.s32 %v111, %v107
    %v116 = vadd.s32 %v112, %v114
    %v117 = vadd.s32 %v116, %v106
    %v118 = vadd.s32 %v117, %v108
    %v119 = vmul.u32 %v74, %v65
    %v120 = vadd.s32 %v96, %v115
    %vm121 = vc.u32 %v96, %v115
    %v122 = vadd.s32 %v118, 1
    %v123 = vsel %vm121, %v122, %v118
    %v124 = vadd.s32 %v119, %v123
    %v125 = vadd.s32 %v124, 536870912
    %v126 = vshrl.u32 %v125, 30
    %v127 = vshll.u32 %v126, 30
    %v128 = vsub.s32 %v124, %v127
    %vm129 = vcmp.lt.s32.totalorder %v128, 0
    %v130 = vsub.s32 0, %v128
    %v131 = vsel %vm129, %v130, %v128
    %v132 = vclz %v131
    %v133 = vsub.s32 %v132, 2
    %vm134 = vcmp.gt.s32.totalorder 0, %v133
    %v135 = vsel %vm134, 0, %v133
    %v136 = vsub.s32 32, %v135
    %v137 = vshll.u32 %v128, %v135
    %v138 = vshrl.u32 %v120, %v136
    %v139 = vor.u32 %v137, %v138
    %v140 = vsub.s32 4294967266, %v135
    %v141 = vadd.s32 %v140, 127
    %v142 = vshll.u32 %v141, 23
    %v143 = vor.u32 4788187, %v142
    %v144 = vand.u32 2147483647, %v143
    %v146 = vcvt.s32.f32 %v139
    %v147 = vmul.f32 %v146, %v144
    %v148 = vxor.u32 %v147, 2147483648
    %v149 = vsel %vm28, %v148, %v147
    %v150 = vsub.s32 4, %v126
    %v151 = vsel %vm28, %v150, %v126
    %v152 = vsel %vm27, %v25, %v149
    %v153 = vsel %vm27, 0, %v151
    %v154 = vmul.f32 %v152, %v152
    %v155 = vmul.f32 %v154, -0.001358992
    %v156 = vadd.f32 %v155, 0.041655596
    %v157 = vmul.f32 %v154, %v156
    %v158 = vadd.f32 %v157, -0.4999988
    %v159 = vmul.f32 %v154, %v158
    %v160 = vadd.f32 1.0, %v159
    %v161 = vmul.f32 %v152, %v152
    %v162 = vmul.f32 %v161, -0.00019511016
    %v163 = vadd.f32 %v162, 0.008332121
    %v164 = vmul.f32 %v161, %v163
    %v165 = vadd.f32 %v164, -0.16666654
    %v166 = vmul.f32 %v161, %v165
    %v167 = vadd.f32 %v166, 1.0
    %v168 = vmul.f32 %v167, %v152
    %vm169 = vweird.f32 %v25
    %v170 = vand.u32 %v153, 3
    %vm171 = vcmp.lt.s32.totalorder %v170, 2
    %vm172 = vcmp.eq.s32.totalorder %v170, 0
    %v173 = vxor.u32 %v168, 2147483648
    %v174 = vsel %vm172, %v160, %v173
    %vm175 = vcmp.eq.s32.totalorder %v170, 2
    %v176 = vxor.u32 %v160, 2147483648
    %v177 = vsel %vm175, %v176, %v168
    %v178 = vsel %vm171, %v174, %v177
    %v179 = vsel %vm169, nan, %v178
    %s180 = scalar_lea.vmem %s1, 8
    %v181 = vld [vmem:[%s180] sm:$0xff]
    %v182 = vmul.f32 %v181, 0.5
    %v183 = vand.u32 2147483647, %v182
    %vm184 = vcmp.le.f32.partialorder %v183, 0.7853982
    %vm185 = vcmp.lt.s32.totalorder %v182, 0
    %v186 = vand.u32 %v182, 2139095040
    %v187 = vshrl.u32 %v186, 23
    %v188 = vsub.s32 %v187, 127
    %v189 = vand.u32 2147483647, %v182
    %v190 = vand.u32 %v189, 8388607
    %v191 = vor.u32 %v190, 8388608
    %v192 = vsub.s32 0, %v191
    %v193 = vadd.s32 %v188, 1
    %vm194 = vcmp.gt.s32.totalorder %v193, 0
    %v195 = vsel %vm194, %v193, 0
    %v196 = vshrl.u32 %v195, 5
    %v197 = vand.u32 %v195, 31
    %v198 = vsub.s32 32, %v197
    %v199 = vshrl.u32 683565275, %v198
    %v200 = vshll.u32 683565275, %v197
    %v201 = vshrl.u32 2475754826, %v198
    %v202 = vor.u32 %v200, %v201
    %v203 = vshll.u32 2475754826, %v197
    %v204 = vshrl.u32 2131351028, %v198
    %v205 = vor.u32 %v203, %v204
    %v206 = vshll.u32 2131351028, %v197
    %v207 = vshrl.u32 2102212464, %v198
    %v208 = vor.u32 %v206, %v207
    %v209 = vshll.u32 2102212464, %v197
    %v210 = vshrl.u32 920167782, %v198
    %v211 = vor.u32 %v209, %v210
    %v212 = vshll.u32 920167782, %v197
    %v213 = vshrl.u32 1326507024, %v198
    %v214 = vor.u32 %v212, %v213
    %vm215 = vcmp.lt.s32.totalorder %v196, 1
    %vm216 = vcmp.lt.s32.totalorder %v196, 2
    %vm217 = vcmp.lt.s32.totalorder %v196, 3
    %vm218 = vcmp.lt.s32.totalorder %v196, 4
    %v219 = vsel %vm215, %v199, %v202
    %v220 = vsel %vm218, %v208, 2102212464
    %v221 = vsel %vm217, %v205, %v220
    %v222 = vsel %vm216, %v219, %v221
    %v223 = vsel %vm215, %v202, %v205
    %v224 = vsel %vm218, %v211, 920167782
    %v225 = vsel %vm217, %v208, %v224
    %v226 = vsel %vm216, %v223, %v225
    %v227 = vsel %vm215, %v205, %v208
    %v228 = vsel %vm218, %v214, 1326507024
    %v229 = vsel %vm217, %v211, %v228
    %v230 = vsel %vm216, %v227, %v229
    %v231 = vshll.u32 %v191, 8
    %v232 = vand.u32 %v231, 65535
    %v233 = vshrl.u32 %v231, 16
    %v234 = vand.u32 %v230, 65535
    %v235 = vshrl.u32 %v230, 16
    %v236 = vmul.u32 %v232, %v234
    %v237 = vmul.u32 %v232, %v235
    %v238 = vmul.u32 %v233, %v234
    %v239 = vmul.u32 %v233, %v235
    %v240 = vshll.u32 %v237, 16
    %v241 = vshrl.u32 %v237, 16
    %v242 = vshll.u32 %v238, 16
    %v243 = vshrl.u32 %v238, 16
    %vm244 = vc.u32 %v236, %v240
    %v245 = vsel %vm244, 1, 0
    %v246 = vadd.s32 %v236, %v240
    %v247 = vadd.s32 %v239, %v245
    %vm248 = vc.u32 %v246, %v242
    %v249 = vsel %vm248, 1, 0
    %v250 = vadd.s32 %v246, %v242
    %v251 = vadd.s32 %v247, %v249
    %v252 = vadd.s32 %v251, %v241
    %v253 = vadd.s32 %v252, %v243
    %v254 = vand.u32 %v231, 65535
    %v255 = vshrl.u32 %v231, 16
    %v256 = vand.u32 %v226, 65535
    %v257 = vshrl.u32 %v226, 16
    %v258 = vmul.u32 %v254, %v256
    %v259 = vmul.u32 %v254, %v257
    %v260 = vmul.u32 %v255, %v256
    %v261 = vmul.u32 %v255, %v257
    %v262 = vshll.u32 %v259, 16
    %v263 = vshrl.u32 %v259, 16
    %v264 = vshll.u32 %v260, 16
    %v265 = vshrl.u32 %v260, 16
    %vm266 = vc.u32 %v258, %v262
    %v267 = vsel %vm266, 1, 0
    %v268 = vadd.s32 %v258, %v262
    %v269 = vadd.s32 %v261, %v267
    %vm270 = vc.u32 %v268, %v264
    %v271 = vsel %vm270, 1, 0
    %v272 = vadd.s32 %v268, %v264
    %v273 = vadd.s32 %v269, %v271
    %v274 = vadd.s32 %v273, %v263
    %v275 = vadd.s32 %v274, %v265
    %v276 = vmul.u32 %v231, %v222
    %v277 = vadd.s32 %v253, %v272
    %vm278 = vc.u32 %v253, %v272
    %v279 = vadd.s32 %v275, 1
    %v280 = vsel %vm278, %v279, %v275
    %v281 = vadd.s32 %v276, %v280
    %v282 = vadd.s32 %v281, 536870912
    %v283 = vshrl.u32 %v282, 30
    %v284 = vshll.u32 %v283, 30
    %v285 = vsub.s32 %v281, %v284
    %vm286 = vcmp.lt.s32.totalorder %v285, 0
    %v287 = vsub.s32 0, %v285
    %v288 = vsel %vm286, %v287, %v285
    %v289 = vclz %v288
    %v290 = vsub.s32 %v289, 2
    %vm291 = vcmp.gt.s32.totalorder 0, %v290
    %v292 = vsel %vm291, 0, %v290
    %v293 = vsub.s32 32, %v292
    %v294 = vshll.u32 %v285, %v292
    %v295 = vshrl.u32 %v277, %v293
    %v296 = vor.u32 %v294, %v295
    %v297 = vsub.s32 4294967266, %v292
    %v298 = vadd.s32 %v297, 127
    %v299 = vshll.u32 %v298, 23
    %v300 = vor.u32 4788187, %v299
    %v301 = vand.u32 2147483647, %v300
    %v303 = vcvt.s32.f32 %v296
    %v304 = vmul.f32 %v303, %v301
    %v305 = vxor.u32 %v304, 2147483648
    %v306 = vsel %vm185, %v305, %v304
    %v307 = vsub.s32 4, %v283
    %v308 = vsel %vm185, %v307, %v283
    %v309 = vsel %vm184, %v182, %v306
    %v310 = vsel %vm184, 0, %v308
    %v311 = vmul.f32 %v309, %v309
    %v312 = vmul.f32 %v311, -0.001358992
    %v313 = vadd.f32 %v312, 0.041655596
    %v314 = vmul.f32 %v311, %v313
    %v315 = vadd.f32 %v314, -0.4999988
    %v316 = vmul.f32 %v311, %v315
    %v317 = vadd.f32 1.0, %v316
    %v318 = vmul.f32 %v309, %v309
    %v319 = vmul.f32 %v318, -0.00019511016
    %v320 = vadd.f32 %v319, 0.008332121
    %v321 = vmul.f32 %v318, %v320
    %v322 = vadd.f32 %v321, -0.16666654
    %v323 = vmul.f32 %v318, %v322
    %v324 = vadd.f32 %v323, 1.0
    %v325 = vmul.f32 %v324, %v309
    %vm326 = vweird.f32 %v182
    %v327 = vand.u32 %v310, 3
    %vm328 = vcmp.lt.s32.totalorder %v327, 2
    %vm329 = vcmp.eq.s32.totalorder %v327, 0
    %v330 = vxor.u32 %v325, 2147483648
    %v331 = vsel %vm329, %v317, %v330
    %vm332 = vcmp.eq.s32.totalorder %v327, 2
    %v333 = vxor.u32 %v317, 2147483648
    %v334 = vsel %vm332, %v333, %v325
    %v335 = vsel %vm328, %v331, %v334
    %v336 = vsel %vm326, nan, %v335
    %s337 = scalar_lea.vmem %s1, 16
    %v338 = vld [vmem:[%s337] sm:$0xff]
    %v339 = vmul.f32 %v338, 0.5
    %v340 = vand.u32 2147483647, %v339
    %vm341 = vcmp.le.f32.partialorder %v340, 0.7853982
    %vm342 = vcmp.lt.s32.totalorder %v339, 0
    %v343 = vand.u32 %v339, 2139095040
    %v344 = vshrl.u32 %v343, 23
    %v345 = vsub.s32 %v344, 127
    %v346 = vand.u32 2147483647, %v339
    %v347 = vand.u32 %v346, 8388607
    %v348 = vor.u32 %v347, 8388608
    %v349 = vsub.s32 0, %v348
    %v350 = vadd.s32 %v345, 1
    %vm351 = vcmp.gt.s32.totalorder %v350, 0
    %v352 = vsel %vm351, %v350, 0
    %v353 = vshrl.u32 %v352, 5
    %v354 = vand.u32 %v352, 31
    %v355 = vsub.s32 32, %v354
    %v356 = vshrl.u32 683565275, %v355
    %v357 = vshll.u32 683565275, %v354
    %v358 = vshrl.u32 2475754826, %v355
    %v359 = vor.u32 %v357, %v358
    %v360 = vshll.u32 2475754826, %v354
    %v361 = vshrl.u32 2131351028, %v355
    %v362 = vor.u32 %v360, %v361
    %v363 = vshll.u32 2131351028, %v354
    %v364 = vshrl.u32 2102212464, %v355
    %v365 = vor.u32 %v363, %v364
    %v366 = vshll.u32 2102212464, %v354
    %v367 = vshrl.u32 920167782, %v355
    %v368 = vor.u32 %v366, %v367
    %v369 = vshll.u32 920167782, %v354
    %v370 = vshrl.u32 1326507024, %v355
    %v371 = vor.u32 %v369, %v370
    %vm372 = vcmp.lt.s32.totalorder %v353, 1
    %vm373 = vcmp.lt.s32.totalorder %v353, 2
    %vm374 = vcmp.lt.s32.totalorder %v353, 3
    %vm375 = vcmp.lt.s32.totalorder %v353, 4
    %v376 = vsel %vm372, %v356, %v359
    %v377 = vsel %vm375, %v365, 2102212464
    %v378 = vsel %vm374, %v362, %v377
    %v379 = vsel %vm373, %v376, %v378
    %v380 = vsel %vm372, %v359, %v362
    %v381 = vsel %vm375, %v368, 920167782
    %v382 = vsel %vm374, %v365, %v381
    %v383 = vsel %vm373, %v380, %v382
    %v384 = vsel %vm372, %v362, %v365
    %v385 = vsel %vm375, %v371, 1326507024
    %v386 = vsel %vm374, %v368, %v385
    %v387 = vsel %vm373, %v384, %v386
    %v388 = vshll.u32 %v348, 8
    %v389 = vand.u32 %v388, 65535
    %v390 = vshrl.u32 %v388, 16
    %v391 = vand.u32 %v387, 65535
    %v392 = vshrl.u32 %v387, 16
    %v393 = vmul.u32 %v389, %v391
    %v394 = vmul.u32 %v389, %v392
    %v395 = vmul.u32 %v390, %v391
    %v396 = vmul.u32 %v390, %v392
    %v397 = vshll.u32 %v394, 16
    %v398 = vshrl.u32 %v394, 16
    %v399 = vshll.u32 %v395, 16
    %v400 = vshrl.u32 %v395, 16
    %vm401 = vc.u32 %v393, %v397
    %v402 = vsel %vm401, 1, 0
    %v403 = vadd.s32 %v393, %v397
    %v404 = vadd.s32 %v396, %v402
    %vm405 = vc.u32 %v403, %v399
    %v406 = vsel %vm405, 1, 0
    %v407 = vadd.s32 %v403, %v399
    %v408 = vadd.s32 %v404, %v406
    %v409 = vadd.s32 %v408, %v398
    %v410 = vadd.s32 %v409, %v400
    %v411 = vand.u32 %v388, 65535
    %v412 = vshrl.u32 %v388, 16
    %v413 = vand.u32 %v383, 65535
    %v414 = vshrl.u32 %v383, 16
    %v415 = vmul.u32 %v411, %v413
    %v416 = vmul.u32 %v411, %v414
    %v417 = vmul.u32 %v412, %v413
    %v418 = vmul.u32 %v412, %v414
    %v419 = vshll.u32 %v416, 16
    %v420 = vshrl.u32 %v416, 16
    %v421 = vshll.u32 %v417, 16
    %v422 = vshrl.u32 %v417, 16
    %vm423 = vc.u32 %v415, %v419
    %v424 = vsel %vm423, 1, 0
    %v425 = vadd.s32 %v415, %v419
    %v426 = vadd.s32 %v418, %v424
    %vm427 = vc.u32 %v425, %v421
    %v428 = vsel %vm427, 1, 0
    %v429 = vadd.s32 %v425, %v421
    %v430 = vadd.s32 %v426, %v428
    %v431 = vadd.s32 %v430, %v420
    %v432 = vadd.s32 %v431, %v422
    %v433 = vmul.u32 %v388, %v379
    %v434 = vadd.s32 %v410, %v429
    %vm435 = vc.u32 %v410, %v429
    %v436 = vadd.s32 %v432, 1
    %v437 = vsel %vm435, %v436, %v432
    %v438 = vadd.s32 %v433, %v437
    %v439 = vadd.s32 %v438, 536870912
    %v440 = vshrl.u32 %v439, 30
    %v441 = vshll.u32 %v440, 30
    %v442 = vsub.s32 %v438, %v441
    %vm443 = vcmp.lt.s32.totalorder %v442, 0
    %v444 = vsub.s32 0, %v442
    %v445 = vsel %vm443, %v444, %v442
    %v446 = vclz %v445
    %v447 = vsub.s32 %v446, 2
    %vm448 = vcmp.gt.s32.totalorder 0, %v447
    %v449 = vsel %vm448, 0, %v447
    %v450 = vsub.s32 32, %v449
    %v451 = vshll.u32 %v442, %v449
    %v452 = vshrl.u32 %v434, %v450
    %v453 = vor.u32 %v451, %v452
    %v454 = vsub.s32 4294967266, %v449
    %v455 = vadd.s32 %v454, 127
    %v456 = vshll.u32 %v455, 23
    %v457 = vor.u32 4788187, %v456
    %v458 = vand.u32 2147483647, %v457
    %v460 = vcvt.s32.f32 %v453
    %v461 = vmul.f32 %v460, %v458
    %v462 = vxor.u32 %v461, 2147483648
    %v463 = vsel %vm342, %v462, %v461
    %v464 = vsub.s32 4, %v440
    %v465 = vsel %vm342, %v464, %v440
    %v466 = vsel %vm341, %v339, %v463
    %v467 = vsel %vm341, 0, %v465
    %v468 = vmul.f32 %v466, %v466
    %v469 = vmul.f32 %v468, -0.001358992
    %v470 = vadd.f32 %v469, 0.041655596
    %v471 = vmul.f32 %v468, %v470
    %v472 = vadd.f32 %v471, -0.4999988
    %v473 = vmul.f32 %v468, %v472
    %v474 = vadd.f32 1.0, %v473
    %v475 = vmul.f32 %v466, %v466
    %v476 = vmul.f32 %v475, -0.00019511016
    %v477 = vadd.f32 %v476, 0.008332121
    %v478 = vmul.f32 %v475, %v477
    %v479 = vadd.f32 %v478, -0.16666654
    %v480 = vmul.f32 %v475, %v479
    %v481 = vadd.f32 %v480, 1.0
    %v482 = vmul.f32 %v481, %v466
    %vm483 = vweird.f32 %v339
    %v484 = vand.u32 %v467, 3
    %vm485 = vcmp.lt.s32.totalorder %v484, 2
    %vm486 = vcmp.eq.s32.totalorder %v484, 0
    %v487 = vxor.u32 %v482, 2147483648
    %v488 = vsel %vm486, %v474, %v487
    %vm489 = vcmp.eq.s32.totalorder %v484, 2
    %v490 = vxor.u32 %v474, 2147483648
    %v491 = vsel %vm489, %v490, %v482
    %v492 = vsel %vm485, %v488, %v491
    %v493 = vsel %vm483, nan, %v492
    %s494 = scalar_lea.vmem %s1, 24
    %v495 = vld [vmem:[%s494] sm:$0xff]
    %v496 = vmul.f32 %v495, 0.5
    %v497 = vand.u32 2147483647, %v496
    %vm498 = vcmp.le.f32.partialorder %v497, 0.7853982
    %vm499 = vcmp.lt.s32.totalorder %v496, 0
    %v500 = vand.u32 %v496, 2139095040
    %v501 = vshrl.u32 %v500, 23
    %v502 = vsub.s32 %v501, 127
    %v503 = vand.u32 2147483647, %v496
    %v504 = vand.u32 %v503, 8388607
    %v505 = vor.u32 %v504, 8388608
    %v506 = vsub.s32 0, %v505
    %v507 = vadd.s32 %v502, 1
    %vm508 = vcmp.gt.s32.totalorder %v507, 0
    %v509 = vsel %vm508, %v507, 0
    %v510 = vshrl.u32 %v509, 5
    %v511 = vand.u32 %v509, 31
    %v512 = vsub.s32 32, %v511
    %v513 = vshrl.u32 683565275, %v512
    %v514 = vshll.u32 683565275, %v511
    %v515 = vshrl.u32 2475754826, %v512
    %v516 = vor.u32 %v514, %v515
    %v517 = vshll.u32 2475754826, %v511
    %v518 = vshrl.u32 2131351028, %v512
    %v519 = vor.u32 %v517, %v518
    %v520 = vshll.u32 2131351028, %v511
    %v521 = vshrl.u32 2102212464, %v512
    %v522 = vor.u32 %v520, %v521
    %v523 = vshll.u32 2102212464, %v511
    %v524 = vshrl.u32 920167782, %v512
    %v525 = vor.u32 %v523, %v524
    %v526 = vshll.u32 920167782, %v511
    %v527 = vshrl.u32 1326507024, %v512
    %v528 = vor.u32 %v526, %v527
    %vm529 = vcmp.lt.s32.totalorder %v510, 1
    %vm530 = vcmp.lt.s32.totalorder %v510, 2
    %vm531 = vcmp.lt.s32.totalorder %v510, 3
    %vm532 = vcmp.lt.s32.totalorder %v510, 4
    %v533 = vsel %vm529, %v513, %v516
    %v534 = vsel %vm532, %v522, 2102212464
    %v535 = vsel %vm531, %v519, %v534
    %v536 = vsel %vm530, %v533, %v535
    %v537 = vsel %vm529, %v516, %v519
    %v538 = vsel %vm532, %v525, 920167782
    %v539 = vsel %vm531, %v522, %v538
    %v540 = vsel %vm530, %v537, %v539
    %v541 = vsel %vm529, %v519, %v522
    %v542 = vsel %vm532, %v528, 1326507024
    %v543 = vsel %vm531, %v525, %v542
    %v544 = vsel %vm530, %v541, %v543
    %v545 = vshll.u32 %v505, 8
    %v546 = vand.u32 %v545, 65535
    %v547 = vshrl.u32 %v545, 16
    %v548 = vand.u32 %v544, 65535
    %v549 = vshrl.u32 %v544, 16
    %v550 = vmul.u32 %v546, %v548
    %v551 = vmul.u32 %v546, %v549
    %v552 = vmul.u32 %v547, %v548
    %v553 = vmul.u32 %v547, %v549
    %v554 = vshll.u32 %v551, 16
    %v555 = vshrl.u32 %v551, 16
    %v556 = vshll.u32 %v552, 16
    %v557 = vshrl.u32 %v552, 16
    %vm558 = vc.u32 %v550, %v554
    %v559 = vsel %vm558, 1, 0
    %v560 = vadd.s32 %v550, %v554
    %v561 = vadd.s32 %v553, %v559
    %vm562 = vc.u32 %v560, %v556
    %v563 = vsel %vm562, 1, 0
    %v564 = vadd.s32 %v560, %v556
    %v565 = vadd.s32 %v561, %v563
    %v566 = vadd.s32 %v565, %v555
    %v567 = vadd.s32 %v566, %v557
    %v568 = vand.u32 %v545, 65535
    %v569 = vshrl.u32 %v545, 16
    %v570 = vand.u32 %v540, 65535
    %v571 = vshrl.u32 %v540, 16
    %v572 = vmul.u32 %v568, %v570
    %v573 = vmul.u32 %v568, %v571
    %v574 = vmul.u32 %v569, %v570
    %v575 = vmul.u32 %v569, %v571
    %v576 = vshll.u32 %v573, 16
    %v577 = vshrl.u32 %v573, 16
    %v578 = vshll.u32 %v574, 16
    %v579 = vshrl.u32 %v574, 16
    %vm580 = vc.u32 %v572, %v576
    %v581 = vsel %vm580, 1, 0
    %v582 = vadd.s32 %v572, %v576
    %v583 = vadd.s32 %v575, %v581
    %vm584 = vc.u32 %v582, %v578
    %v585 = vsel %vm584, 1, 0
    %v586 = vadd.s32 %v582, %v578
    %v587 = vadd.s32 %v583, %v585
    %v588 = vadd.s32 %v587, %v577
    %v589 = vadd.s32 %v588, %v579
    %v590 = vmul.u32 %v545, %v536
    %v591 = vadd.s32 %v567, %v586
    %vm592 = vc.u32 %v567, %v586
    %v593 = vadd.s32 %v589, 1
    %v594 = vsel %vm592, %v593, %v589
    %v595 = vadd.s32 %v590, %v594
    %v596 = vadd.s32 %v595, 536870912
    %v597 = vshrl.u32 %v596, 30
    %v598 = vshll.u32 %v597, 30
    %v599 = vsub.s32 %v595, %v598
    %vm600 = vcmp.lt.s32.totalorder %v599, 0
    %v601 = vsub.s32 0, %v599
    %v602 = vsel %vm600, %v601, %v599
    %v603 = vclz %v602
    %v604 = vsub.s32 %v603, 2
    %vm605 = vcmp.gt.s32.totalorder 0, %v604
    %v606 = vsel %vm605, 0, %v604
    %v607 = vsub.s32 32, %v606
    %v608 = vshll.u32 %v599, %v606
    %v609 = vshrl.u32 %v591, %v607
    %v610 = vor.u32 %v608, %v609
    %v611 = vsub.s32 4294967266, %v606
    %v612 = vadd.s32 %v611, 127
    %v613 = vshll.u32 %v612, 23
    %v614 = vor.u32 4788187, %v613
    %v615 = vand.u32 2147483647, %v614
    %v617 = vcvt.s32.f32 %v610
    %v618 = vmul.f32 %v617, %v615
    %v619 = vxor.u32 %v618, 2147483648
    %v620 = vsel %vm499, %v619, %v618
    %v621 = vsub.s32 4, %v597
    %v622 = vsel %vm499, %v621, %v597
    %v623 = vsel %vm498, %v496, %v620
    %v624 = vsel %vm498, 0, %v622
    %v625 = vmul.f32 %v623, %v623
    %v626 = vmul.f32 %v625, -0.001358992
    %v627 = vadd.f32 %v626, 0.041655596
    %v628 = vmul.f32 %v625, %v627
    %v629 = vadd.f32 %v628, -0.4999988
    %v630 = vmul.f32 %v625, %v629
    %v631 = vadd.f32 1.0, %v630
    %v632 = vmul.f32 %v623, %v623
    %v633 = vmul.f32 %v632, -0.00019511016
    %v634 = vadd.f32 %v633, 0.008332121
    %v635 = vmul.f32 %v632, %v634
    %v636 = vadd.f32 %v635, -0.16666654
    %v637 = vmul.f32 %v632, %v636
    %v638 = vadd.f32 %v637, 1.0
    %v639 = vmul.f32 %v638, %v623
    %vm640 = vweird.f32 %v496
    %v641 = vand.u32 %v624, 3
    %vm642 = vcmp.lt.s32.totalorder %v641, 2
    %vm643 = vcmp.eq.s32.totalorder %v641, 0
    %v644 = vxor.u32 %v639, 2147483648
    %v645 = vsel %vm643, %v631, %v644
    %vm646 = vcmp.eq.s32.totalorder %v641, 2
    %v647 = vxor.u32 %v631, 2147483648
    %v648 = vsel %vm646, %v647, %v639
    %v649 = vsel %vm642, %v645, %v648
    %v650 = vsel %vm640, nan, %v649
    %v651 = vand.u32 2147483647, %v25
    %vm652 = vcmp.le.f32.partialorder %v651, 0.7853982
    %vm653 = vcmp.lt.s32.totalorder %v25, 0
    %v654 = vand.u32 %v25, 2139095040
    %v655 = vshrl.u32 %v654, 23
    %v656 = vsub.s32 %v655, 127
    %v657 = vand.u32 2147483647, %v25
    %v658 = vand.u32 %v657, 8388607
    %v659 = vor.u32 %v658, 8388608
    %v660 = vsub.s32 0, %v659
    %v661 = vadd.s32 %v656, 1
    %vm662 = vcmp.gt.s32.totalorder %v661, 0
    %v663 = vsel %vm662, %v661, 0
    %v664 = vshrl.u32 %v663, 5
    %v665 = vand.u32 %v663, 31
    %v666 = vsub.s32 32, %v665
    %v667 = vshrl.u32 683565275, %v666
    %v668 = vshll.u32 683565275, %v665
    %v669 = vshrl.u32 2475754826, %v666
    %v670 = vor.u32 %v668, %v669
    %v671 = vshll.u32 2475754826, %v665
    %v672 = vshrl.u32 2131351028, %v666
    %v673 = vor.u32 %v671, %v672
    %v674 = vshll.u32 2131351028, %v665
    %v675 = vshrl.u32 2102212464, %v666
    %v676 = vor.u32 %v674, %v675
    %v677 = vshll.u32 2102212464, %v665
    %v678 = vshrl.u32 920167782, %v666
    %v679 = vor.u32 %v677, %v678
    %v680 = vshll.u32 920167782, %v665
    %v681 = vshrl.u32 1326507024, %v666
    %v682 = vor.u32 %v680, %v681
    %vm683 = vcmp.lt.s32.totalorder %v664, 1
    %vm684 = vcmp.lt.s32.totalorder %v664, 2
    %vm685 = vcmp.lt.s32.totalorder %v664, 3
    %vm686 = vcmp.lt.s32.totalorder %v664, 4
    %v687 = vsel %vm683, %v667, %v670
    %v688 = vsel %vm686, %v676, 2102212464
    %v689 = vsel %vm685, %v673, %v688
    %v690 = vsel %vm684, %v687, %v689
    %v691 = vsel %vm683, %v670, %v673
    %v692 = vsel %vm686, %v679, 920167782
    %v693 = vsel %vm685, %v676, %v692
    %v694 = vsel %vm684, %v691, %v693
    %v695 = vsel %vm683, %v673, %v676
    %v696 = vsel %vm686, %v682, 1326507024
    %v697 = vsel %vm685, %v679, %v696
    %v698 = vsel %vm684, %v695, %v697
    %v699 = vshll.u32 %v659, 8
    %v700 = vand.u32 %v699, 65535
    %v701 = vshrl.u32 %v699, 16
    %v702 = vand.u32 %v698, 65535
    %v703 = vshrl.u32 %v698, 16
    %v704 = vmul.u32 %v700, %v702
    %v705 = vmul.u32 %v700, %v703
    %v706 = vmul.u32 %v701, %v702
    %v707 = vmul.u32 %v701, %v703
    %v708 = vshll.u32 %v705, 16
    %v709 = vshrl.u32 %v705, 16
    %v710 = vshll.u32 %v706, 16
    %v711 = vshrl.u32 %v706, 16
    %vm712 = vc.u32 %v704, %v708
    %v713 = vsel %vm712, 1, 0
    %v714 = vadd.s32 %v704, %v708
    %v715 = vadd.s32 %v707, %v713
    %vm716 = vc.u32 %v714, %v710
    %v717 = vsel %vm716, 1, 0
    %v718 = vadd.s32 %v714, %v710
    %v719 = vadd.s32 %v715, %v717
    %v720 = vadd.s32 %v719, %v709
    %v721 = vadd.s32 %v720, %v711
    %v722 = vand.u32 %v699, 65535
    %v723 = vshrl.u32 %v699, 16
    %v724 = vand.u32 %v694, 65535
    %v725 = vshrl.u32 %v694, 16
    %v726 = vmul.u32 %v722, %v724
    %v727 = vmul.u32 %v722, %v725
    %v728 = vmul.u32 %v723, %v724
    %v729 = vmul.u32 %v723, %v725
    %v730 = vshll.u32 %v727, 16
    %v731 = vshrl.u32 %v727, 16
    %v732 = vshll.u32 %v728, 16
    %v733 = vshrl.u32 %v728, 16
    %vm734 = vc.u32 %v726, %v730
    %v735 = vsel %vm734, 1, 0
    %v736 = vadd.s32 %v726, %v730
    %v737 = vadd.s32 %v729, %v735
    %vm738 = vc.u32 %v736, %v732
    %v739 = vsel %vm738, 1, 0
    %v740 = vadd.s32 %v736, %v732
    %v741 = vadd.s32 %v737, %v739
    %v742 = vadd.s32 %v741, %v731
    %v743 = vadd.s32 %v742, %v733
    %v744 = vmul.u32 %v699, %v690
    %v745 = vadd.s32 %v721, %v740
    %vm746 = vc.u32 %v721, %v740
    %v747 = vadd.s32 %v743, 1
    %v748 = vsel %vm746, %v747, %v743
    %v749 = vadd.s32 %v744, %v748
    %v750 = vadd.s32 %v749, 536870912
    %v751 = vshrl.u32 %v750, 30
    %v752 = vshll.u32 %v751, 30
    %v753 = vsub.s32 %v749, %v752
    %vm754 = vcmp.lt.s32.totalorder %v753, 0
    %v755 = vsub.s32 0, %v753
    %v756 = vsel %vm754, %v755, %v753
    %v757 = vclz %v756
    %v758 = vsub.s32 %v757, 2
    %vm759 = vcmp.gt.s32.totalorder 0, %v758
    %v760 = vsel %vm759, 0, %v758
    %v761 = vsub.s32 32, %v760
    %v762 = vshll.u32 %v753, %v760
    %v763 = vshrl.u32 %v745, %v761
    %v764 = vor.u32 %v762, %v763
    %v765 = vsub.s32 4294967266, %v760
    %v766 = vadd.s32 %v765, 127
    %v767 = vshll.u32 %v766, 23
    %v768 = vor.u32 4788187, %v767
    %v769 = vand.u32 2147483647, %v768
    %v771 = vcvt.s32.f32 %v764
    %v772 = vmul.f32 %v771, %v769
    %v773 = vxor.u32 %v772, 2147483648
    %v774 = vsel %vm653, %v773, %v772
    %v775 = vsub.s32 4, %v751
    %v776 = vsel %vm653, %v775, %v751
    %v777 = vsel %vm652, %v25, %v774
    %v778 = vsel %vm652, 0, %v776
    %v779 = vmul.f32 %v777, %v777
    %v780 = vmul.f32 %v779, -0.001358992
    %v781 = vadd.f32 %v780, 0.041655596
    %v782 = vmul.f32 %v779, %v781
    %v783 = vadd.f32 %v782, -0.4999988
    %v784 = vmul.f32 %v779, %v783
    %v785 = vadd.f32 1.0, %v784
    %v786 = vmul.f32 %v777, %v777
    %v787 = vmul.f32 %v786, -0.00019511016
    %v788 = vadd.f32 %v787, 0.008332121
    %v789 = vmul.f32 %v786, %v788
    %v790 = vadd.f32 %v789, -0.16666654
    %v791 = vmul.f32 %v786, %v790
    %v792 = vadd.f32 %v791, 1.0
    %v793 = vmul.f32 %v792, %v777
    %vm794 = vweird.f32 %v25
    %v795 = vadd.s32 %v778, 3
    %v796 = vand.u32 %v795, 3
    %vm797 = vcmp.lt.s32.totalorder %v796, 2
    %vm798 = vcmp.eq.s32.totalorder %v796, 0
    %v799 = vxor.u32 %v793, 2147483648
    %v800 = vsel %vm798, %v785, %v799
    %vm801 = vcmp.eq.s32.totalorder %v796, 2
    %v802 = vxor.u32 %v785, 2147483648
    %v803 = vsel %vm801, %v802, %v793
    %v804 = vsel %vm797, %v800, %v803
    %v805 = vsel %vm794, nan, %v804
    %v806 = vand.u32 2147483647, %v182
    %vm807 = vcmp.le.f32.partialorder %v806, 0.7853982
    %vm808 = vcmp.lt.s32.totalorder %v182, 0
    %v809 = vand.u32 %v182, 2139095040
    %v810 = vshrl.u32 %v809, 23
    %v811 = vsub.s32 %v810, 127
    %v812 = vand.u32 2147483647, %v182
    %v813 = vand.u32 %v812, 8388607
    %v814 = vor.u32 %v813, 8388608
    %v815 = vsub.s32 0, %v814
    %v816 = vadd.s32 %v811, 1
    %vm817 = vcmp.gt.s32.totalorder %v816, 0
    %v818 = vsel %vm817, %v816, 0
    %v819 = vshrl.u32 %v818, 5
    %v820 = vand.u32 %v818, 31
    %v821 = vsub.s32 32, %v820
    %v822 = vshrl.u32 683565275, %v821
    %v823 = vshll.u32 683565275, %v820
    %v824 = vshrl.u32 2475754826, %v821
    %v825 = vor.u32 %v823, %v824
    %v826 = vshll.u32 2475754826, %v820
    %v827 = vshrl.u32 2131351028, %v821
    %v828 = vor.u32 %v826, %v827
    %v829 = vshll.u32 2131351028, %v820
    %v830 = vshrl.u32 2102212464, %v821
    %v831 = vor.u32 %v829, %v830
    %v832 = vshll.u32 2102212464, %v820
    %v833 = vshrl.u32 920167782, %v821
    %v834 = vor.u32 %v832, %v833
    %v835 = vshll.u32 920167782, %v820
    %v836 = vshrl.u32 1326507024, %v821
    %v837 = vor.u32 %v835, %v836
    %vm838 = vcmp.lt.s32.totalorder %v819, 1
    %vm839 = vcmp.lt.s32.totalorder %v819, 2
    %vm840 = vcmp.lt.s32.totalorder %v819, 3
    %vm841 = vcmp.lt.s32.totalorder %v819, 4
    %v842 = vsel %vm838, %v822, %v825
    %v843 = vsel %vm841, %v831, 2102212464
    %v844 = vsel %vm840, %v828, %v843
    %v845 = vsel %vm839, %v842, %v844
    %v846 = vsel %vm838, %v825, %v828
    %v847 = vsel %vm841, %v834, 920167782
    %v848 = vsel %vm840, %v831, %v847
    %v849 = vsel %vm839, %v846, %v848
    %v850 = vsel %vm838, %v828, %v831
    %v851 = vsel %vm841, %v837, 1326507024
    %v852 = vsel %vm840, %v834, %v851
    %v853 = vsel %vm839, %v850, %v852
    %v854 = vshll.u32 %v814, 8
    %v855 = vand.u32 %v854, 65535
    %v856 = vshrl.u32 %v854, 16
    %v857 = vand.u32 %v853, 65535
    %v858 = vshrl.u32 %v853, 16
    %v859 = vmul.u32 %v855, %v857
    %v860 = vmul.u32 %v855, %v858
    %v861 = vmul.u32 %v856, %v857
    %v862 = vmul.u32 %v856, %v858
    %v863 = vshll.u32 %v860, 16
    %v864 = vshrl.u32 %v860, 16
    %v865 = vshll.u32 %v861, 16
    %v866 = vshrl.u32 %v861, 16
    %vm867 = vc.u32 %v859, %v863
    %v868 = vsel %vm867, 1, 0
    %v869 = vadd.s32 %v859, %v863
    %v870 = vadd.s32 %v862, %v868
    %vm871 = vc.u32 %v869, %v865
    %v872 = vsel %vm871, 1, 0
    %v873 = vadd.s32 %v869, %v865
    %v874 = vadd.s32 %v870, %v872
    %v875 = vadd.s32 %v874, %v864
    %v876 = vadd.s32 %v875, %v866
    %v877 = vand.u32 %v854, 65535
    %v878 = vshrl.u32 %v854, 16
    %v879 = vand.u32 %v849, 65535
    %v880 = vshrl.u32 %v849, 16
    %v881 = vmul.u32 %v877, %v879
    %v882 = vmul.u32 %v877, %v880
    %v883 = vmul.u32 %v878, %v879
    %v884 = vmul.u32 %v878, %v880
    %v885 = vshll.u32 %v882, 16
    %v886 = vshrl.u32 %v882, 16
    %v887 = vshll.u32 %v883, 16
    %v888 = vshrl.u32 %v883, 16
    %vm889 = vc.u32 %v881, %v885
    %v890 = vsel %vm889, 1, 0
    %v891 = vadd.s32 %v881, %v885
    %v892 = vadd.s32 %v884, %v890
    %vm893 = vc.u32 %v891, %v887
    %v894 = vsel %vm893, 1, 0
    %v895 = vadd.s32 %v891, %v887
    %v896 = vadd.s32 %v892, %v894
    %v897 = vadd.s32 %v896, %v886
    %v898 = vadd.s32 %v897, %v888
    %v899 = vmul.u32 %v854, %v845
    %v900 = vadd.s32 %v876, %v895
    %vm901 = vc.u32 %v876, %v895
    %v902 = vadd.s32 %v898, 1
    %v903 = vsel %vm901, %v902, %v898
    %v904 = vadd.s32 %v899, %v903
    %v905 = vadd.s32 %v904, 536870912
    %v906 = vshrl.u32 %v905, 30
    %v907 = vshll.u32 %v906, 30
    %v908 = vsub.s32 %v904, %v907
    %vm909 = vcmp.lt.s32.totalorder %v908, 0
    %v910 = vsub.s32 0, %v908
    %v911 = vsel %vm909, %v910, %v908
    %v912 = vclz %v911
    %v913 = vsub.s32 %v912, 2
    %vm914 = vcmp.gt.s32.totalorder 0, %v913
    %v915 = vsel %vm914, 0, %v913
    %v916 = vsub.s32 32, %v915
    %v917 = vshll.u32 %v908, %v915
    %v918 = vshrl.u32 %v900, %v916
    %v919 = vor.u32 %v917, %v918
    %v920 = vsub.s32 4294967266, %v915
    %v921 = vadd.s32 %v920, 127
    %v922 = vshll.u32 %v921, 23
    %v923 = vor.u32 4788187, %v922
    %v924 = vand.u32 2147483647, %v923
    %v926 = vcvt.s32.f32 %v919
    %v927 = vmul.f32 %v926, %v924
    %v928 = vxor.u32 %v927, 2147483648
    %v929 = vsel %vm808, %v928, %v927
    %v930 = vsub.s32 4, %v906
    %v931 = vsel %vm808, %v930, %v906
    %v932 = vsel %vm807, %v182, %v929
    %v933 = vsel %vm807, 0, %v931
    %v934 = vmul.f32 %v932, %v932
    %v935 = vmul.f32 %v934, -0.001358992
    %v936 = vadd.f32 %v935, 0.041655596
    %v937 = vmul.f32 %v934, %v936
    %v938 = vadd.f32 %v937, -0.4999988
    %v939 = vmul.f32 %v934, %v938
    %v940 = vadd.f32 1.0, %v939
    %v941 = vmul.f32 %v932, %v932
    %v942 = vmul.f32 %v941, -0.00019511016
    %v943 = vadd.f32 %v942, 0.008332121
    %v944 = vmul.f32 %v941, %v943
    %v945 = vadd.f32 %v944, -0.16666654
    %v946 = vmul.f32 %v941, %v945
    %v947 = vadd.f32 %v946, 1.0
    %v948 = vmul.f32 %v947, %v932
    %vm949 = vweird.f32 %v182
    %v950 = vadd.s32 %v933, 3
    %v951 = vand.u32 %v950, 3
    %vm952 = vcmp.lt.s32.totalorder %v951, 2
    %vm953 = vcmp.eq.s32.totalorder %v951, 0
    %v954 = vxor.u32 %v948, 2147483648
    %v955 = vsel %vm953, %v940, %v954
    %vm956 = vcmp.eq.s32.totalorder %v951, 2
    %v957 = vxor.u32 %v940, 2147483648
    %v958 = vsel %vm956, %v957, %v948
    %v959 = vsel %vm952, %v955, %v958
    %v960 = vsel %vm949, nan, %v959
    %v961 = vand.u32 2147483647, %v339
    %vm962 = vcmp.le.f32.partialorder %v961, 0.7853982
    %vm963 = vcmp.lt.s32.totalorder %v339, 0
    %v964 = vand.u32 %v339, 2139095040
    %v965 = vshrl.u32 %v964, 23
    %v966 = vsub.s32 %v965, 127
    %v967 = vand.u32 2147483647, %v339
    %v968 = vand.u32 %v967, 8388607
    %v969 = vor.u32 %v968, 8388608
    %v970 = vsub.s32 0, %v969
    %v971 = vadd.s32 %v966, 1
    %vm972 = vcmp.gt.s32.totalorder %v971, 0
    %v973 = vsel %vm972, %v971, 0
    %v974 = vshrl.u32 %v973, 5
    %v975 = vand.u32 %v973, 31
    %v976 = vsub.s32 32, %v975
    %v977 = vshrl.u32 683565275, %v976
    %v978 = vshll.u32 683565275, %v975
    %v979 = vshrl.u32 2475754826, %v976
    %v980 = vor.u32 %v978, %v979
    %v981 = vshll.u32 2475754826, %v975
    %v982 = vshrl.u32 2131351028, %v976
    %v983 = vor.u32 %v981, %v982
    %v984 = vshll.u32 2131351028, %v975
    %v985 = vshrl.u32 2102212464, %v976
    %v986 = vor.u32 %v984, %v985
    %v987 = vshll.u32 2102212464, %v975
    %v988 = vshrl.u32 920167782, %v976
    %v989 = vor.u32 %v987, %v988
    %v990 = vshll.u32 920167782, %v975
    %v991 = vshrl.u32 1326507024, %v976
    %v992 = vor.u32 %v990, %v991
    %vm993 = vcmp.lt.s32.totalorder %v974, 1
    %vm994 = vcmp.lt.s32.totalorder %v974, 2
    %vm995 = vcmp.lt.s32.totalorder %v974, 3
    %vm996 = vcmp.lt.s32.totalorder %v974, 4
    %v997 = vsel %vm993, %v977, %v980
    %v998 = vsel %vm996, %v986, 2102212464
    %v999 = vsel %vm995, %v983, %v998
    %v1000 = vsel %vm994, %v997, %v999
    %v1001 = vsel %vm993, %v980, %v983
    %v1002 = vsel %vm996, %v989, 920167782
    %v1003 = vsel %vm995, %v986, %v1002
    %v1004 = vsel %vm994, %v1001, %v1003
    %v1005 = vsel %vm993, %v983, %v986
    %v1006 = vsel %vm996, %v992, 1326507024
    %v1007 = vsel %vm995, %v989, %v1006
    %v1008 = vsel %vm994, %v1005, %v1007
    %v1009 = vshll.u32 %v969, 8
    %v1010 = vand.u32 %v1009, 65535
    %v1011 = vshrl.u32 %v1009, 16
    %v1012 = vand.u32 %v1008, 65535
    %v1013 = vshrl.u32 %v1008, 16
    %v1014 = vmul.u32 %v1010, %v1012
    %v1015 = vmul.u32 %v1010, %v1013
    %v1016 = vmul.u32 %v1011, %v1012
    %v1017 = vmul.u32 %v1011, %v1013
    %v1018 = vshll.u32 %v1015, 16
    %v1019 = vshrl.u32 %v1015, 16
    %v1020 = vshll.u32 %v1016, 16
    %v1021 = vshrl.u32 %v1016, 16
    %vm1022 = vc.u32 %v1014, %v1018
    %v1023 = vsel %vm1022, 1, 0
    %v1024 = vadd.s32 %v1014, %v1018
    %v1025 = vadd.s32 %v1017, %v1023
    %vm1026 = vc.u32 %v1024, %v1020
    %v1027 = vsel %vm1026, 1, 0
    %v1028 = vadd.s32 %v1024, %v1020
    %v1029 = vadd.s32 %v1025, %v1027
    %v1030 = vadd.s32 %v1029, %v1019
    %v1031 = vadd.s32 %v1030, %v1021
    %v1032 = vand.u32 %v1009, 65535
    %v1033 = vshrl.u32 %v1009, 16
    %v1034 = vand.u32 %v1004, 65535
    %v1035 = vshrl.u32 %v1004, 16
    %v1036 = vmul.u32 %v1032, %v1034
    %v1037 = vmul.u32 %v1032, %v1035
    %v1038 = vmul.u32 %v1033, %v1034
    %v1039 = vmul.u32 %v1033, %v1035
    %v1040 = vshll.u32 %v1037, 16
    %v1041 = vshrl.u32 %v1037, 16
    %v1042 = vshll.u32 %v1038, 16
    %v1043 = vshrl.u32 %v1038, 16
    %vm1044 = vc.u32 %v1036, %v1040
    %v1045 = vsel %vm1044, 1, 0
    %v1046 = vadd.s32 %v1036, %v1040
    %v1047 = vadd.s32 %v1039, %v1045
    %vm1048 = vc.u32 %v1046, %v1042
    %v1049 = vsel %vm1048, 1, 0
    %v1050 = vadd.s32 %v1046, %v1042
    %v1051 = vadd.s32 %v1047, %v1049
    %v1052 = vadd.s32 %v1051, %v1041
    %v1053 = vadd.s32 %v1052, %v1043
    %v1054 = vmul.u32 %v1009, %v1000
    %v1055 = vadd.s32 %v1031, %v1050
    %vm1056 = vc.u32 %v1031, %v1050
    %v1057 = vadd.s32 %v1053, 1
    %v1058 = vsel %vm1056, %v1057, %v1053
    %v1059 = vadd.s32 %v1054, %v1058
    %v1060 = vadd.s32 %v1059, 536870912
    %v1061 = vshrl.u32 %v1060, 30
    %v1062 = vshll.u32 %v1061, 30
    %v1063 = vsub.s32 %v1059, %v1062
    %vm1064 = vcmp.lt.s32.totalorder %v1063, 0
    %v1065 = vsub.s32 0, %v1063
    %v1066 = vsel %vm1064, %v1065, %v1063
    %v1067 = vclz %v1066
    %v1068 = vsub.s32 %v1067, 2
    %vm1069 = vcmp.gt.s32.totalorder 0, %v1068
    %v1070 = vsel %vm1069, 0, %v1068
    %v1071 = vsub.s32 32, %v1070
    %v1072 = vshll.u32 %v1063, %v1070
    %v1073 = vshrl.u32 %v1055, %v1071
    %v1074 = vor.u32 %v1072, %v1073
    %v1075 = vsub.s32 4294967266, %v1070
    %v1076 = vadd.s32 %v1075, 127
    %v1077 = vshll.u32 %v1076, 23
    %v1078 = vor.u32 4788187, %v1077
    %v1079 = vand.u32 2147483647, %v1078
    %v1081 = vcvt.s32.f32 %v1074
    %v1082 = vmul.f32 %v1081, %v1079
    %v1083 = vxor.u32 %v1082, 2147483648
    %v1084 = vsel %vm963, %v1083, %v1082
    %v1085 = vsub.s32 4, %v1061
    %v1086 = vsel %vm963, %v1085, %v1061
    %v1087 = vsel %vm962, %v339, %v1084
    %v1088 = vsel %vm962, 0, %v1086
    %v1089 = vmul.f32 %v1087, %v1087
    %v1090 = vmul.f32 %v1089, -0.001358992
    %v1091 = vadd.f32 %v1090, 0.041655596
    %v1092 = vmul.f32 %v1089, %v1091
    %v1093 = vadd.f32 %v1092, -0.4999988
    %v1094 = vmul.f32 %v1089, %v1093
    %v1095 = vadd.f32 1.0, %v1094
    %v1096 = vmul.f32 %v1087, %v1087
    %v1097 = vmul.f32 %v1096, -0.00019511016
    %v1098 = vadd.f32 %v1097, 0.008332121
    %v1099 = vmul.f32 %v1096, %v1098
    %v1100 = vadd.f32 %v1099, -0.16666654
    %v1101 = vmul.f32 %v1096, %v1100
    %v1102 = vadd.f32 %v1101, 1.0
    %v1103 = vmul.f32 %v1102, %v1087
    %vm1104 = vweird.f32 %v339
    %v1105 = vadd.s32 %v1088, 3
    %v1106 = vand.u32 %v1105, 3
    %vm1107 = vcmp.lt.s32.totalorder %v1106, 2
    %vm1108 = vcmp.eq.s32.totalorder %v1106, 0
    %v1109 = vxor.u32 %v1103, 2147483648
    %v1110 = vsel %vm1108, %v1095, %v1109
    %vm1111 = vcmp.eq.s32.totalorder %v1106, 2
    %v1112 = vxor.u32 %v1095, 2147483648
    %v1113 = vsel %vm1111, %v1112, %v1103
    %v1114 = vsel %vm1107, %v1110, %v1113
    %v1115 = vsel %vm1104, nan, %v1114
    %v1116 = vand.u32 2147483647, %v496
    %vm1117 = vcmp.le.f32.partialorder %v1116, 0.7853982
    %vm1118 = vcmp.lt.s32.totalorder %v496, 0
    %v1119 = vand.u32 %v496, 2139095040
    %v1120 = vshrl.u32 %v1119, 23
    %v1121 = vsub.s32 %v1120, 127
    %v1122 = vand.u32 2147483647, %v496
    %v1123 = vand.u32 %v1122, 8388607
    %v1124 = vor.u32 %v1123, 8388608
    %v1125 = vsub.s32 0, %v1124
    %v1126 = vadd.s32 %v1121, 1
    %vm1127 = vcmp.gt.s32.totalorder %v1126, 0
    %v1128 = vsel %vm1127, %v1126, 0
    %v1129 = vshrl.u32 %v1128, 5
    %v1130 = vand.u32 %v1128, 31
    %v1131 = vsub.s32 32, %v1130
    %v1132 = vshrl.u32 683565275, %v1131
    %v1133 = vshll.u32 683565275, %v1130
    %v1134 = vshrl.u32 2475754826, %v1131
    %v1135 = vor.u32 %v1133, %v1134
    %v1136 = vshll.u32 2475754826, %v1130
    %v1137 = vshrl.u32 2131351028, %v1131
    %v1138 = vor.u32 %v1136, %v1137
    %v1139 = vshll.u32 2131351028, %v1130
    %v1140 = vshrl.u32 2102212464, %v1131
    %v1141 = vor.u32 %v1139, %v1140
    %v1142 = vshll.u32 2102212464, %v1130
    %v1143 = vshrl.u32 920167782, %v1131
    %v1144 = vor.u32 %v1142, %v1143
    %v1145 = vshll.u32 920167782, %v1130
    %v1146 = vshrl.u32 1326507024, %v1131
    %v1147 = vor.u32 %v1145, %v1146
    %vm1148 = vcmp.lt.s32.totalorder %v1129, 1
    %vm1149 = vcmp.lt.s32.totalorder %v1129, 2
    %vm1150 = vcmp.lt.s32.totalorder %v1129, 3
    %vm1151 = vcmp.lt.s32.totalorder %v1129, 4
    %v1152 = vsel %vm1148, %v1132, %v1135
    %v1153 = vsel %vm1151, %v1141, 2102212464
    %v1154 = vsel %vm1150, %v1138, %v1153
    %v1155 = vsel %vm1149, %v1152, %v1154
    %v1156 = vsel %vm1148, %v1135, %v1138
    %v1157 = vsel %vm1151, %v1144, 920167782
    %v1158 = vsel %vm1150, %v1141, %v1157
    %v1159 = vsel %vm1149, %v1156, %v1158
    %v1160 = vsel %vm1148, %v1138, %v1141
    %v1161 = vsel %vm1151, %v1147, 1326507024
    %v1162 = vsel %vm1150, %v1144, %v1161
    %v1163 = vsel %vm1149, %v1160, %v1162
    %v1164 = vshll.u32 %v1124, 8
    %v1165 = vand.u32 %v1164, 65535
    %v1166 = vshrl.u32 %v1164, 16
    %v1167 = vand.u32 %v1163, 65535
    %v1168 = vshrl.u32 %v1163, 16
    %v1169 = vmul.u32 %v1165, %v1167
    %v1170 = vmul.u32 %v1165, %v1168
    %v1171 = vmul.u32 %v1166, %v1167
    %v1172 = vmul.u32 %v1166, %v1168
    %v1173 = vshll.u32 %v1170, 16
    %v1174 = vshrl.u32 %v1170, 16
    %v1175 = vshll.u32 %v1171, 16
    %v1176 = vshrl.u32 %v1171, 16
    %vm1177 = vc.u32 %v1169, %v1173
    %v1178 = vsel %vm1177, 1, 0
    %v1179 = vadd.s32 %v1169, %v1173
    %v1180 = vadd.s32 %v1172, %v1178
    %vm1181 = vc.u32 %v1179, %v1175
    %v1182 = vsel %vm1181, 1, 0
    %v1183 = vadd.s32 %v1179, %v1175
    %v1184 = vadd.s32 %v1180, %v1182
    %v1185 = vadd.s32 %v1184, %v1174
    %v1186 = vadd.s32 %v1185, %v1176
    %v1187 = vand.u32 %v1164, 65535
    %v1188 = vshrl.u32 %v1164, 16
    %v1189 = vand.u32 %v1159, 65535
    %v1190 = vshrl.u32 %v1159, 16
    %v1191 = vmul.u32 %v1187, %v1189
    %v1192 = vmul.u32 %v1187, %v1190
    %v1193 = vmul.u32 %v1188, %v1189
    %v1194 = vmul.u32 %v1188, %v1190
    %v1195 = vshll.u32 %v1192, 16
    %v1196 = vshrl.u32 %v1192, 16
    %v1197 = vshll.u32 %v1193, 16
    %v1198 = vshrl.u32 %v1193, 16
    %vm1199 = vc.u32 %v1191, %v1195
    %v1200 = vsel %vm1199, 1, 0
    %v1201 = vadd.s32 %v1191, %v1195
    %v1202 = vadd.s32 %v1194, %v1200
    %vm1203 = vc.u32 %v1201, %v1197
    %v1204 = vsel %vm1203, 1, 0
    %v1205 = vadd.s32 %v1201, %v1197
    %v1206 = vadd.s32 %v1202, %v1204
    %v1207 = vadd.s32 %v1206, %v1196
    %v1208 = vadd.s32 %v1207, %v1198
    %v1209 = vmul.u32 %v1164, %v1155
    %v1210 = vadd.s32 %v1186, %v1205
    %vm1211 = vc.u32 %v1186, %v1205
    %v1212 = vadd.s32 %v1208, 1
    %v1213 = vsel %vm1211, %v1212, %v1208
    %v1214 = vadd.s32 %v1209, %v1213
    %v1215 = vadd.s32 %v1214, 536870912
    %v1216 = vshrl.u32 %v1215, 30
    %v1217 = vshll.u32 %v1216, 30
    %v1218 = vsub.s32 %v1214, %v1217
    %vm1219 = vcmp.lt.s32.totalorder %v1218, 0
    %v1220 = vsub.s32 0, %v1218
    %v1221 = vsel %vm1219, %v1220, %v1218
    %v1222 = vclz %v1221
    %v1223 = vsub.s32 %v1222, 2
    %vm1224 = vcmp.gt.s32.totalorder 0, %v1223
    %v1225 = vsel %vm1224, 0, %v1223
    %v1226 = vsub.s32 32, %v1225
    %v1227 = vshll.u32 %v1218, %v1225
    %v1228 = vshrl.u32 %v1210, %v1226
    %v1229 = vor.u32 %v1227, %v1228
    %v1230 = vsub.s32 4294967266, %v1225
    %v1231 = vadd.s32 %v1230, 127
    %v1232 = vshll.u32 %v1231, 23
    %v1233 = vor.u32 4788187, %v1232
    %v1234 = vand.u32 2147483647, %v1233
    %v1236 = vcvt.s32.f32 %v1229
    %v1237 = vmul.f32 %v1236, %v1234
    %v1238 = vxor.u32 %v1237, 2147483648
    %v1239 = vsel %vm1118, %v1238, %v1237
    %v1240 = vsub.s32 4, %v1216
    %v1241 = vsel %vm1118, %v1240, %v1216
    %v1242 = vsel %vm1117, %v496, %v1239
    %v1243 = vsel %vm1117, 0, %v1241
    %v1244 = vmul.f32 %v1242, %v1242
    %v1245 = vmul.f32 %v1244, -0.001358992
    %v1246 = vadd.f32 %v1245, 0.041655596
    %v1247 = vmul.f32 %v1244, %v1246
    %v1248 = vadd.f32 %v1247, -0.4999988
    %v1249 = vmul.f32 %v1244, %v1248
    %v1250 = vadd.f32 1.0, %v1249
    %v1251 = vmul.f32 %v1242, %v1242
    %v1252 = vmul.f32 %v1251, -0.00019511016
    %v1253 = vadd.f32 %v1252, 0.008332121
    %v1254 = vmul.f32 %v1251, %v1253
    %v1255 = vadd.f32 %v1254, -0.16666654
    %v1256 = vmul.f32 %v1251, %v1255
    %v1257 = vadd.f32 %v1256, 1.0
    %v1258 = vmul.f32 %v1257, %v1242
    %vm1259 = vweird.f32 %v496
    %v1260 = vadd.s32 %v1243, 3
    %v1261 = vand.u32 %v1260, 3
    %vm1262 = vcmp.lt.s32.totalorder %v1261, 2
    %vm1263 = vcmp.eq.s32.totalorder %v1261, 0
    %v1264 = vxor.u32 %v1258, 2147483648
    %v1265 = vsel %vm1263, %v1250, %v1264
    %vm1266 = vcmp.eq.s32.totalorder %v1261, 2
    %v1267 = vxor.u32 %v1250, 2147483648
    %v1268 = vsel %vm1266, %v1267, %v1258
    %v1269 = vsel %vm1262, %v1265, %v1268
    %v1270 = vsel %vm1259, nan, %v1269
    %v1271 = vmul.f32 %v179, %v336
    %v1272 = vmul.f32 %v179, %v960
    %v1273 = vmul.f32 %v805, %v336
    %v1274 = vmul.f32 %v805, %v960
    %v1275 = vmul.f32 %v1271, %v493
    %v1276 = vmul.f32 %v1271, %v1115
    %v1277 = vmul.f32 %v1272, %v493
    %v1278 = vmul.f32 %v1272, %v1115
    %v1279 = vmul.f32 %v1273, %v493
    %v1280 = vmul.f32 %v1273, %v1115
    %v1281 = vmul.f32 %v1274, %v493
    %v1282 = vmul.f32 %v1274, %v1115
    %v1283 = vmul.f32 %v1275, %v650
    %v1284 = vmul.f32 %v1275, %v1270
    %v1285 = vmul.f32 %v1276, %v650
    %v1286 = vmul.f32 %v1276, %v1270
    %v1287 = vmul.f32 %v1277, %v650
    %v1288 = vmul.f32 %v1277, %v1270
    %v1289 = vmul.f32 %v1278, %v650
    %v1290 = vmul.f32 %v1278, %v1270
    %v1291 = vmul.f32 %v1279, %v650
    %v1292 = vmul.f32 %v1279, %v1270
    %v1293 = vmul.f32 %v1280, %v650
    %v1294 = vmul.f32 %v1280, %v1270
    %v1295 = vmul.f32 %v1281, %v650
    %v1296 = vmul.f32 %v1281, %v1270
    %v1297 = vmul.f32 %v1282, %v650
    %v1298 = vmul.f32 %v1282, %v1270
    %v1299 = vsub.f32 0.0, %v1284
    %v1300 = vsub.f32 0.0, %v1285
    %v1301 = vsub.f32 0.0, %v1286
    %v1302 = vsub.f32 0.0, %v1287
    %v1303 = vsub.f32 0.0, %v1288
    %v1304 = vsub.f32 0.0, %v1289
    %v1305 = vsub.f32 0.0, %v1291
    %v1306 = vsub.f32 0.0, %v1292
    %v1307 = vsub.f32 0.0, %v1293
    %v1308 = vsub.f32 0.0, %v1295
    %s1309 = sld [smem:[#allocation2]]
    %s1310 = sld [smem:[#allocation2 + $0x4]]
    %v1311 = vstv %s1309
    %v1312 = vmul.f32 %v1311, %v1283
    %v1313 = vstv %s1310
    %v1314 = vmul.f32 %v1313, %v1305
    %v1315 = vadd.f32 %v1312, %v1314
    %v1316 = vmul.f32 %v1311, 0.0
    %v1317 = vmul.f32 %v1313, 0.0
    %v1318 = vsub.f32 %v1316, %v1317
    %v1319 = vadd.f32 %v1316, %v1317
    %v1320 = vmul.f32 %v1311, %v1305
    %v1321 = vmul.f32 %v1313, %v1283
    %v1322 = vsub.f32 %v1320, %v1321
    %v1323 = vmul.f32 %v1311, %v1299
    %v1324 = vmul.f32 %v1313, %v1306
    %v1325 = vsub.f32 %v1323, %v1324
    %v1326 = vmul.f32 %v1311, %v1306
    %v1327 = vmul.f32 %v1313, %v1299
    %v1328 = vadd.f32 %v1326, %v1327
    %v1329 = vmul.f32 %v1311, %v1300
    %v1330 = vmul.f32 %v1313, %v1307
    %v1331 = vsub.f32 %v1329, %v1330
    %v1332 = vmul.f32 %v1311, %v1307
    %v1333 = vmul.f32 %v1313, %v1300
    %v1334 = vadd.f32 %v1332, %v1333
    %v1335 = vmul.f32 %v1311, %v1301
    %v1336 = vmul.f32 %v1313, %v1294
    %v1337 = vadd.f32 %v1335, %v1336
    %v1338 = vmul.f32 %v1311, %v1294
    %v1339 = vmul.f32 %v1313, %v1301
    %v1340 = vsub.f32 %v1338, %v1339
    %v1341 = vmul.f32 %v1311, %v1302
    %v1342 = vmul.f32 %v1313, %v1308
    %v1343 = vsub.f32 %v1341, %v1342
    %v1344 = vmul.f32 %v1311, %v1308
    %v1345 = vmul.f32 %v1313, %v1302
    %v1346 = vadd.f32 %v1344, %v1345
    %v1347 = vmul.f32 %v1311, %v1303
    %v1348 = vmul.f32 %v1313, %v1296
    %v1349 = vadd.f32 %v1347, %v1348
    %v1350 = vmul.f32 %v1311, %v1296
    %v1351 = vmul.f32 %v1313, %v1303
    %v1352 = vsub.f32 %v1350, %v1351
    %v1353 = vmul.f32 %v1311, %v1304
    %v1354 = vmul.f32 %v1313, %v1297
    %v1355 = vadd.f32 %v1353, %v1354
    %v1356 = vmul.f32 %v1311, %v1297
    %v1357 = vmul.f32 %v1313, %v1304
    %v1358 = vsub.f32 %v1356, %v1357
    %v1359 = vmul.f32 %v1311, %v1290
    %v1360 = vmul.f32 %v1313, %v1298
    %v1361 = vsub.f32 %v1359, %v1360
    %v1362 = vmul.f32 %v1311, %v1298
    %v1363 = vmul.f32 %v1313, %v1290
    %v1364 = vadd.f32 %v1362, %v1363
    %s1365 = sld [smem:[#allocation2 + $0x1]]
    %s1366 = sld [smem:[#allocation2 + $0x5]]
    %v1367 = vstv %s1365
    %v1368 = vmul.f32 %v1367, %v1315
    %v1369 = vstv %s1366
    %v1370 = vmul.f32 %v1369, %v1343
    %v1371 = vadd.f32 %v1368, %v1370
    %v1372 = vmul.f32 %v1367, %v1318
    %v1373 = vmul.f32 %v1369, %v1319
    %v1374 = vsub.f32 %v1372, %v1373
    %v1375 = vmul.f32 %v1367, %v1319
    %v1376 = vmul.f32 %v1369, %v1318
    %v1377 = vadd.f32 %v1375, %v1376
    %v1378 = vmul.f32 %v1367, %v1343
    %v1379 = vmul.f32 %v1369, %v1315
    %v1380 = vsub.f32 %v1378, %v1379
    %v1381 = vmul.f32 %v1367, %v1325
    %v1382 = vmul.f32 %v1369, %v1349
    %v1383 = vsub.f32 %v1381, %v1382
    %v1384 = vmul.f32 %v1367, %v1349
    %v1385 = vmul.f32 %v1369, %v1325
    %v1386 = vadd.f32 %v1384, %v1385
    %v1387 = vmul.f32 %v1367, %v1331
    %v1388 = vmul.f32 %v1369, %v1355
    %v1389 = vsub.f32 %v1387, %v1388
    %v1390 = vmul.f32 %v1367, %v1355
    %v1391 = vmul.f32 %v1369, %v1331
    %v1392 = vadd.f32 %v1390, %v1391
    %v1393 = vmul.f32 %v1367, %v1337
    %v1394 = vmul.f32 %v1369, %v1361
    %v1395 = vadd.f32 %v1393, %v1394
    %v1396 = vmul.f32 %v1367, %v1361
    %v1397 = vmul.f32 %v1369, %v1337
    %v1398 = vsub.f32 %v1396, %v1397
    %v1399 = vmul.f32 %v1367, %v1322
    %v1400 = vmul.f32 %v1369, %v1346
    %v1401 = vsub.f32 %v1399, %v1400
    %v1402 = vmul.f32 %v1367, %v1346
    %v1403 = vmul.f32 %v1369, %v1322
    %v1404 = vadd.f32 %v1402, %v1403
    %v1405 = vmul.f32 %v1367, %v1328
    %v1406 = vmul.f32 %v1369, %v1352
    %v1407 = vadd.f32 %v1405, %v1406
    %v1408 = vmul.f32 %v1367, %v1352
    %v1409 = vmul.f32 %v1369, %v1328
    %v1410 = vsub.f32 %v1408, %v1409
    %v1411 = vmul.f32 %v1367, %v1334
    %v1412 = vmul.f32 %v1369, %v1358
    %v1413 = vadd.f32 %v1411, %v1412
    %v1414 = vmul.f32 %v1367, %v1358
    %v1415 = vmul.f32 %v1369, %v1334
    %v1416 = vsub.f32 %v1414, %v1415
    %v1417 = vmul.f32 %v1367, %v1340
    %v1418 = vmul.f32 %v1369, %v1364
    %v1419 = vsub.f32 %v1417, %v1418
    %v1420 = vmul.f32 %v1367, %v1364
    %v1421 = vmul.f32 %v1369, %v1340
    %v1422 = vadd.f32 %v1420, %v1421
    %s1423 = sld [smem:[#allocation2 + $0x2]]
    %s1424 = sld [smem:[#allocation2 + $0x6]]
    %v1425 = vstv %s1423
    %v1426 = vmul.f32 %v1425, %v1371
    %v1427 = vstv %s1424
    %v1428 = vmul.f32 %v1427, %v1389
    %v1429 = vadd.f32 %v1426, %v1428
    %v1430 = vmul.f32 %v1425, %v1374
    %v1431 = vmul.f32 %v1427, %v1377
    %v1432 = vsub.f32 %v1430, %v1431
    %v1433 = vmul.f32 %v1425, %v1377
    %v1434 = vmul.f32 %v1427, %v1374
    %v1435 = vadd.f32 %v1433, %v1434
    %v1436 = vmul.f32 %v1425, %v1389
    %v1437 = vmul.f32 %v1427, %v1371
    %v1438 = vsub.f32 %v1436, %v1437
    %v1439 = vmul.f32 %v1425, %v1383
    %v1440 = vmul.f32 %v1427, %v1395
    %v1441 = vsub.f32 %v1439, %v1440
    %v1442 = vmul.f32 %v1425, %v1395
    %v1443 = vmul.f32 %v1427, %v1383
    %v1444 = vadd.f32 %v1442, %v1443
    %v1445 = vmul.f32 %v1425, %v1380
    %v1446 = vmul.f32 %v1427, %v1392
    %v1447 = vsub.f32 %v1445, %v1446
    %v1448 = vmul.f32 %v1425, %v1392
    %v1449 = vmul.f32 %v1427, %v1380
    %v1450 = vadd.f32 %v1448, %v1449
    %v1451 = vmul.f32 %v1425, %v1386
    %v1452 = vmul.f32 %v1427, %v1398
    %v1453 = vadd.f32 %v1451, %v1452
    %v1454 = vmul.f32 %v1425, %v1398
    %v1455 = vmul.f32 %v1427, %v1386
    %v1456 = vsub.f32 %v1454, %v1455
    %v1457 = vmul.f32 %v1425, %v1401
    %v1458 = vmul.f32 %v1427, %v1413
    %v1459 = vsub.f32 %v1457, %v1458
    %v1460 = vmul.f32 %v1425, %v1413
    %v1461 = vmul.f32 %v1427, %v1401
    %v1462 = vadd.f32 %v1460, %v1461
    %v1463 = vmul.f32 %v1425, %v1407
    %v1464 = vmul.f32 %v1427, %v1419
    %v1465 = vadd.f32 %v1463, %v1464
    %v1466 = vmul.f32 %v1425, %v1419
    %v1467 = vmul.f32 %v1427, %v1407
    %v1468 = vsub.f32 %v1466, %v1467
    %v1469 = vmul.f32 %v1425, %v1404
    %v1470 = vmul.f32 %v1427, %v1416
    %v1471 = vadd.f32 %v1469, %v1470
    %v1472 = vmul.f32 %v1425, %v1416
    %v1473 = vmul.f32 %v1427, %v1404
    %v1474 = vsub.f32 %v1472, %v1473
    %v1475 = vmul.f32 %v1425, %v1410
    %v1476 = vmul.f32 %v1427, %v1422
    %v1477 = vsub.f32 %v1475, %v1476
    %v1478 = vmul.f32 %v1425, %v1422
    %v1479 = vmul.f32 %v1427, %v1410
    %v1480 = vadd.f32 %v1478, %v1479
    %s1481 = sld [smem:[#allocation2 + $0x3]]
    %s1482 = sld [smem:[#allocation2 + $0x7]]
    %v1483 = vstv %s1481
    %v1484 = vmul.f32 %v1483, %v1429
    %v1485 = vstv %s1482
    %v1486 = vmul.f32 %v1485, %v1441
    %v1487 = vadd.f32 %v1484, %v1486
    %v1488 = vmul.f32 %v1483, %v1432
    %v1489 = vmul.f32 %v1485, %v1435
    %v1490 = vsub.f32 %v1488, %v1489
    %v1491 = vmul.f32 %v1483, %v1435
    %v1492 = vmul.f32 %v1485, %v1432
    %v1493 = vadd.f32 %v1491, %v1492
    %v1494 = vmul.f32 %v1483, %v1441
    %v1495 = vmul.f32 %v1485, %v1429
    %v1496 = vsub.f32 %v1494, %v1495
    %v1497 = vmul.f32 %v1483, %v1438
    %v1498 = vmul.f32 %v1485, %v1444
    %v1499 = vsub.f32 %v1497, %v1498
    %v1500 = vmul.f32 %v1483, %v1444
    %v1501 = vmul.f32 %v1485, %v1438
    %v1502 = vadd.f32 %v1500, %v1501
    %v1503 = vmul.f32 %v1483, %v1447
    %v1504 = vmul.f32 %v1485, %v1453
    %v1505 = vsub.f32 %v1503, %v1504
    %v1506 = vmul.f32 %v1483, %v1453
    %v1507 = vmul.f32 %v1485, %v1447
    %v1508 = vadd.f32 %v1506, %v1507
    %v1509 = vmul.f32 %v1483, %v1450
    %v1510 = vmul.f32 %v1485, %v1456
    %v1511 = vadd.f32 %v1509, %v1510
    %v1512 = vmul.f32 %v1483, %v1456
    %v1513 = vmul.f32 %v1485, %v1450
    %v1514 = vsub.f32 %v1512, %v1513
    %v1515 = vmul.f32 %v1483, %v1459
    %v1516 = vmul.f32 %v1485, %v1465
    %v1517 = vsub.f32 %v1515, %v1516
    %v1518 = vmul.f32 %v1483, %v1465
    %v1519 = vmul.f32 %v1485, %v1459
    %v1520 = vadd.f32 %v1518, %v1519
    %v1521 = vmul.f32 %v1483, %v1462
    %v1522 = vmul.f32 %v1485, %v1468
    %v1523 = vadd.f32 %v1521, %v1522
    %v1524 = vmul.f32 %v1483, %v1468
    %v1525 = vmul.f32 %v1485, %v1462
    %v1526 = vsub.f32 %v1524, %v1525
    %v1527 = vmul.f32 %v1483, %v1471
    %v1528 = vmul.f32 %v1485, %v1477
    %v1529 = vadd.f32 %v1527, %v1528
    %v1530 = vmul.f32 %v1483, %v1477
    %v1531 = vmul.f32 %v1485, %v1471
    %v1532 = vsub.f32 %v1530, %v1531
    %v1533 = vmul.f32 %v1483, %v1474
    %v1534 = vmul.f32 %v1485, %v1480
    %v1535 = vsub.f32 %v1533, %v1534
    %v1536 = vmul.f32 %v1483, %v1480
    %v1537 = vmul.f32 %v1485, %v1474
    %v1538 = vadd.f32 %v1536, %v1537
    %v1539 = vmul.f32 %v1487, %v1487
    %v1540 = vmul.f32 %v1490, %v1490
    %v1541 = vadd.f32 %v1539, %v1540
    %v1542 = vmul.f32 %v1493, %v1493
    %v1543 = vmul.f32 %v1532, %v1532
    %v1544 = vadd.f32 %v1542, %v1543
    %v1545 = vmul.f32 %v1502, %v1502
    %v1546 = vadd.f32 %v1545, %v1540
    %v1547 = vmul.f32 %v1535, %v1535
    %v1548 = vadd.f32 %v1542, %v1547
    %v1549 = vmul.f32 %v1511, %v1511
    %v1550 = vadd.f32 %v1549, %v1540
    %v1551 = vmul.f32 %v1526, %v1526
    %v1552 = vadd.f32 %v1542, %v1551
    %v1553 = vmul.f32 %v1508, %v1508
    %v1554 = vadd.f32 %v1553, %v1540
    %v1555 = vmul.f32 %v1517, %v1517
    %v1556 = vadd.f32 %v1542, %v1555
    %v1557 = vmul.f32 %v1529, %v1529
    %v1558 = vadd.f32 %v1557, %v1540
    %v1559 = vmul.f32 %v1496, %v1496
    %v1560 = vadd.f32 %v1542, %v1559
    %v1561 = vmul.f32 %v1538, %v1538
    %v1562 = vadd.f32 %v1561, %v1540
    %v1563 = vmul.f32 %v1499, %v1499
    %v1564 = vadd.f32 %v1542, %v1563
    %v1565 = vmul.f32 %v1523, %v1523
    %v1566 = vadd.f32 %v1565, %v1540
    %v1567 = vmul.f32 %v1514, %v1514
    %v1568 = vadd.f32 %v1542, %v1567
    %v1569 = vmul.f32 %v1520, %v1520
    %v1570 = vadd.f32 %v1569, %v1540
    %v1571 = vmul.f32 %v1505, %v1505
    %v1572 = vadd.f32 %v1542, %v1571
    %v1573 = vadd.f32 %v1541, %v1544
    %v1574 = vadd.f32 %v1573, %v1546
    %v1575 = vadd.f32 %v1574, %v1548
    %v1576 = vadd.f32 %v1575, %v1550
    %v1577 = vadd.f32 %v1576, %v1552
    %v1578 = vadd.f32 %v1577, %v1554
    %v1579 = vadd.f32 %v1578, %v1556
    %v1580 = vadd.f32 %v1558, %v1560
    %v1581 = vadd.f32 %v1580, %v1562
    %v1582 = vadd.f32 %v1581, %v1564
    %v1583 = vadd.f32 %v1582, %v1566
    %v1584 = vadd.f32 %v1583, %v1568
    %v1585 = vadd.f32 %v1584, %v1570
    %v1586 = vadd.f32 %v1585, %v1572
    %v1587 = vsub.f32 %v1579, %v1586
    %1588 = vst [vmem:[%s2] sm:$0xff] %v1587
    %v1589 = vadd.f32 %v1550, %v1552
    %v1590 = vadd.f32 %v1589, %v1554
    %v1591 = vadd.f32 %v1590, %v1556
    %v1592 = vadd.f32 %v1575, %v1558
    %v1593 = vadd.f32 %v1592, %v1560
    %v1594 = vadd.f32 %v1593, %v1562
    %v1595 = vadd.f32 %v1594, %v1564
    %v1596 = vadd.f32 %v1591, %v1566
    %v1597 = vadd.f32 %v1596, %v1568
    %v1598 = vadd.f32 %v1597, %v1570
    %v1599 = vadd.f32 %v1598, %v1572
    %v1600 = vsub.f32 %v1595, %v1599
    %s1601 = scalar_lea.vmem %s2, 8
    %1602 = vst [vmem:[%s1601] sm:$0xff] %v1600
    %v1603 = vadd.f32 %v1546, %v1548
    %v1604 = vadd.f32 %v1573, %v1550
    %v1605 = vadd.f32 %v1604, %v1552
    %v1606 = vadd.f32 %v1603, %v1554
    %v1607 = vadd.f32 %v1606, %v1556
    %v1608 = vadd.f32 %v1605, %v1558
    %v1609 = vadd.f32 %v1608, %v1560
    %v1610 = vadd.f32 %v1607, %v1562
    %v1611 = vadd.f32 %v1610, %v1564
    %v1612 = vadd.f32 %v1609, %v1566
    %v1613 = vadd.f32 %v1612, %v1568
    %v1614 = vadd.f32 %v1611, %v1570
    %v1615 = vadd.f32 %v1614, %v1572
    %v1616 = vsub.f32 %v1613, %v1615
    %s1617 = scalar_lea.vmem %s2, 16
    %1618 = vst [vmem:[%s1617] sm:$0xff] %v1616
    %v1619 = vadd.f32 %v1541, %v1546
    %v1620 = vadd.f32 %v1544, %v1548
    %v1621 = vadd.f32 %v1619, %v1550
    %v1622 = vadd.f32 %v1620, %v1552
    %v1623 = vadd.f32 %v1621, %v1554
    %v1624 = vadd.f32 %v1622, %v1556
    %v1625 = vadd.f32 %v1623, %v1558
    %v1626 = vadd.f32 %v1624, %v1560
    %v1627 = vadd.f32 %v1625, %v1562
    %v1628 = vadd.f32 %v1626, %v1564
    %v1629 = vadd.f32 %v1627, %v1566
    %v1630 = vadd.f32 %v1628, %v1568
    %v1631 = vadd.f32 %v1629, %v1570
    %v1632 = vadd.f32 %v1630, %v1572
    %v1633 = vsub.f32 %v1631, %v1632
    %s1634 = scalar_lea.vmem %s2, 24
    %1635 = vst [vmem:[%s1634] sm:$0xff] %v1633
    // Predicated region
    $region14: #{quanv2d_forward.1} parent=1 // pred_check
      _
    $region15: #{quanv2d_forward.1} parent=1 // pred_check_branch
      %1637 = sbr.rel (0) target = $region17
    $region16: #{quanv2d_forward.1} parent=1 // pred_region
      _
    $region17: #{quanv2d_forward.1} parent=1 // pred_fallthru
      _
    // Predicated region
    $region18: #{quanv2d_forward.1} parent=1 // pred_check
      _
    $region19: #{quanv2d_forward.1} parent=1 // pred_check_branch
      %1639 = sbr.rel (0) target = $region21
    $region20: #{quanv2d_forward.1} parent=1 // pred_region
      _
    $region21: #{quanv2d_forward.1} parent=1 // pred_fallthru
      _
    %1640 = vsyncpa [#allocation3], 1

</llo_original>
